<compile_context>
chip_gen: v7x
topology: tpu7x:2x2x1
jax: 0.10.0
libtpu: 0.0.40
codegen_flags: <defaults>
</compile_context>

<pallas_src>
import functools
import math

import numpy as np

import jax
import jax.numpy as jnp
from jax.experimental import pallas as pl
from jax.experimental.pallas import tpu as pltpu


def _round_up(x, m):
    return ((x + m - 1) // m) * m


def _device_generation():
    """5 / 6 / 7 for TPU v5e / v6e / v7x; defaults to 6 when undetectable."""
    try:
        kind = jax.devices()[0].device_kind.lower()
    except Exception:  # pragma: no cover - defensive
        return 6
    for g in (7, 6, 5):
        if "v%d" % g in kind:
            return g
    return 6


def _vmem_budget_bytes(gen):
    # Physical per-TensorCore VMEM: 128 MiB (v5e/v6e), 64 MiB (v7x).  Keep
    # headroom for Mosaic-internal scratch / spill.
    return (40 if gen >= 7 else 96) * 1024 * 1024


def _choose_tff(d_model, d_ff, gen):
    """d_ff reduction tile: largest of 512/256/128 dividing d_ff whose
    double-buffered bf16 weight tiles (wi: 2*d_model*tff + wo: tff*d_model
    -> 12*d_model*tff bytes total) stay under ~45% of the VMEM budget."""
    budget = _vmem_budget_bytes(gen)
    largest_divisor = None
    for cand in (512, 256, 128):
        if d_ff % cand == 0:
            if largest_divisor is None:
                largest_divisor = cand
            if 12 * d_model * cand <= 0.45 * budget:
                return cand
    if largest_divisor is not None:
        return largest_divisor
    # Non-128-multiple d_ff: single tile.  Correct, but a perf/VMEM trap for
    # large production shapes (lane slice at a non-128 boundary).
    return d_ff


def _choose_tm(M, d_model, tff, out_itemsize, gen):
    """Row tile.  Weights are re-streamed from HBM once per row block, so the
    arithmetic intensity is ~tm FLOP/byte; push tm as high as VMEM allows
    (512+ targets the MXU roofline on all generations)."""
    budget = _vmem_budget_bytes(gen)
    weight_ws = 12 * d_model * tff                        # double-buffered wi + wo tiles
    # x (2 bufs, bf16) + out (2 bufs) + f32 accumulator, per row of the tile
    row_bytes = d_model * (2 * 2 + 2 * out_itemsize + 4)
    row_budget = max(budget - weight_ws, 128 * row_bytes)
    tm = 128
    for cand in (1024, 512, 256, 128):
        if cand * row_bytes <= row_budget:
            tm = cand
            break
    # Decode / tiny M: round rows up to >=128 (unmasked stores, full MXU
    # passes) but do not over-pad to a huge tile.
    m_round = max(128, _round_up(M, 128))
    tm = min(tm, m_round)
    # Megacore (v7x: 2 TensorCores/chip): keep >= 2 blocks on the parallel
    # rows axis whenever M allows so both cores get work.
    # TODO(synk): for tiny-M decode on v7x, shard d_ff across cores with
    # per-core partial sums instead (one row block cannot feed both TCs).
    if gen >= 7 and m_round >= 256:
        tm = min(tm, max(128, ((m_round // 2) // 128) * 128))
    return tm


def _vmem_limit_bytes(tm, tff, d_model, out_itemsize, gen):
    ws = (12 * d_model * tff                                  # wi + wo tiles (2 bufs, bf16)
          + tm * d_model * (2 * 2 + 2 * out_itemsize + 4)     # x, out (2 bufs), f32 acc
          + 8 * tff)                                          # mask tiles (negligible)
    ceiling = (56 if gen >= 7 else 112) * 1024 * 1024
    return int(min(ceiling, max(32 * 1024 * 1024, ws + 12 * 1024 * 1024)))


def _gelu_new(x):
    # HF ACT2FN['gelu_new'] (tanh approximation).  x*x*x keeps the cube on the
    # VALU; only the tanh hits the single EUP slot.
    c = math.sqrt(2.0 / math.pi)
    return 0.5 * x * (1.0 + jnp.tanh(c * (x + 0.044715 * x * x * x)))


def _ffn_body(x_ref, wi_ref, wo_ref, mask_ref, o_ref, acc_ref):
    # x_ref:    (tm, d_model)       bf16
    # wi_ref:   (d_model, 2*tff)    bf16   [Wi0^T tile | Wi1^T tile]
    # wo_ref:   (tff, d_model)      bf16
    # mask_ref: (1, tff) f32, or None for the dense variant
    # o_ref:    (tm, d_model)       out dtype
    # acc_ref:  (tm, d_model)       f32 scratch, persists across the kff axis
    kff = pl.program_id(1)

    @pl.when(kff == 0)
    def _():
        acc_ref[...] = jnp.zeros_like(acc_ref)

    tff = wo_ref.shape[0]

    # One wide MXU pass covers both the gate and the linear projection.
    h_both = jnp.dot(x_ref[...], wi_ref[...],
                     preferred_element_type=jnp.float32)      # (tm, 2*tff) f32
    h = _gelu_new(h_both[:, :tff]) * h_both[:, tff:]
    if mask_ref is not None:
        h = h * mask_ref[...]          # layer_neuron_mask, broadcast over rows
    # dropout: inference mode -> identity.
    # TODO(synk): training-mode dropout (pltpu.prng_seed / prng_random_bits).

    acc_ref[...] += jnp.dot(h.astype(wo_ref.dtype), wo_ref[...],
                            preferred_element_type=jnp.float32)

    @pl.when(kff == pl.num_programs(1) - 1)
    def _():
        o_ref[...] = acc_ref[...].astype(o_ref.dtype)


def _ffn_kernel_dense(x_ref, wi_ref, wo_ref, o_ref, acc_ref):
    _ffn_body(x_ref, wi_ref, wo_ref, None, o_ref, acc_ref)


def _ffn_kernel_masked(active_idx_ref, x_ref, wi_ref, wo_ref, mask_ref,
                       o_ref, acc_ref):
    del active_idx_ref  # consumed by the index_maps only
    _ffn_body(x_ref, wi_ref, wo_ref, mask_ref, o_ref, acc_ref)


@functools.partial(jax.jit,
                   static_argnames=("tm", "tff", "out_dtype", "vmem_limit"))
def _ffn_pallas_dense(x2d, wi_cat, wo_t, *, tm, tff, out_dtype, vmem_limit):
    M_pad, d_model = x2d.shape
    n_ff = wi_cat.shape[0]
    d_ff = n_ff * tff
    n_row = M_pad // tm
    grid = (n_row, n_ff)

    weight_sweep_bytes = 6 * d_model * d_ff          # bf16 wi_cat + wo_t, one full pass
    cost = pl.CostEstimate(
        flops=6 * M_pad * d_model * d_ff,
        transcendentals=M_pad * d_ff,
        bytes_accessed=(x2d.size * x2d.dtype.itemsize
                        + weight_sweep_bytes * n_row            # weights re-streamed per row block
                        + M_pad * d_model * jnp.dtype(out_dtype).itemsize))

    return pl.pallas_call(
        _ffn_kernel_dense,
        out_shape=jax.ShapeDtypeStruct((M_pad, d_model), out_dtype),
        grid_spec=pltpu.PrefetchScalarGridSpec(
            num_scalar_prefetch=0,
            grid=grid,
            in_specs=[
                pl.BlockSpec((tm, d_model), lambda i, k: (i, 0)),          # x rows (k-invariant)
                pl.BlockSpec((pl.Squeezed(), d_model, 2 * tff),
                             lambda i, k: (k, 0, 0)),                      # Wi tile
                pl.BlockSpec((tff, d_model), lambda i, k: (k, 0)),         # Wo tile
            ],
            out_specs=pl.BlockSpec((tm, d_model), lambda i, k: (i, 0)),
            scratch_shapes=[pltpu.VMEM((tm, d_model), jnp.float32)],
        ),
        compiler_params=pltpu.CompilerParams(
            dimension_semantics=("parallel", "arbitrary"),
            vmem_limit_bytes=vmem_limit,
        ),
        cost_estimate=cost,
    )(x2d, wi_cat, wo_t)


@functools.partial(jax.jit,
                   static_argnames=("tm", "tff", "out_dtype", "vmem_limit"))
def _ffn_pallas_masked(active_idx, x2d, wi_cat, wo_t, mask_row, *,
                       tm, tff, out_dtype, vmem_limit):
    M_pad, d_model = x2d.shape
    n_active = active_idx.shape[0]
    n_row = M_pad // tm
    grid = (n_row, n_active)
    d_ff_active = n_active * tff

    weight_sweep_bytes = 6 * d_model * d_ff_active    # only active tiles are streamed
    cost = pl.CostEstimate(
        flops=6 * M_pad * d_model * d_ff_active,
        transcendentals=M_pad * d_ff_active,
        bytes_accessed=(x2d.size * x2d.dtype.itemsize
                        + (weight_sweep_bytes + 4 * d_ff_active) * n_row
                        + M_pad * d_model * jnp.dtype(out_dtype).itemsize))

    return pl.pallas_call(
        _ffn_kernel_masked,
        out_shape=jax.ShapeDtypeStruct((M_pad, d_model), out_dtype),
        grid_spec=pltpu.PrefetchScalarGridSpec(
            num_scalar_prefetch=1,                    # active d_ff tile indices (SMEM)
            grid=grid,
            in_specs=[
                pl.BlockSpec((tm, d_model), lambda i, k, aidx: (i, 0)),
                pl.BlockSpec((pl.Squeezed(), d_model, 2 * tff),
                             lambda i, k, aidx: (aidx[k], 0, 0)),
                pl.BlockSpec((tff, d_model), lambda i, k, aidx: (aidx[k], 0)),
                pl.BlockSpec((1, tff), lambda i, k, aidx: (0, aidx[k])),
            ],
            out_specs=pl.BlockSpec((tm, d_model), lambda i, k, aidx: (i, 0)),
            scratch_shapes=[pltpu.VMEM((tm, d_model), jnp.float32)],
        ),
        compiler_params=pltpu.CompilerParams(
            dimension_semantics=("parallel", "arbitrary"),
            vmem_limit_bytes=vmem_limit,
        ),
        cost_estimate=cost,
    )(active_idx, x2d, wi_cat, wo_t, mask_row)


class SparseT5DenseGatedGeluDensePallas:
    """JAX/Pallas equivalent of SparseT5DenseGatedGeluDense (inference)."""

    def __init__(self, d_model, d_ff, key, param_dtype=jnp.bfloat16,
                 out_dtype=None):
        self.d_model = d_model
        self.d_ff = d_ff
        self.param_dtype = param_dtype
        # out_dtype=None follows the input dtype (PyTorch semantics).  Pass
        # jnp.bfloat16 to halve output HBM writeback / VMEM when downstream allows.
        self.out_dtype = out_dtype
        self.gen = _device_generation()

        k0, k1, k2 = jax.random.split(key, 3)
        # PyTorch nn.Linear weight is (out, in); store transposed and in bf16
        # (halves HBM weight streaming + VMEM tiles; f32 accumulation in-kernel).
        scale_in = 1.0 / math.sqrt(d_model)
        scale_ff = 1.0 / math.sqrt(d_ff)
        self.wi_0_t = jax.random.uniform(k0, (d_model, d_ff), jnp.float32,
                                         -scale_in, scale_in).astype(param_dtype)
        self.wi_1_t = jax.random.uniform(k1, (d_model, d_ff), jnp.float32,
                                         -scale_in, scale_in).astype(param_dtype)
        self.wo_t = jax.random.uniform(k2, (d_ff, d_model), jnp.float32,
                                       -scale_ff, scale_ff).astype(param_dtype)

        # No sparsify() called -> wo.in_features_sparsified == d_ff.
        # (If sparsified, the pre-sliced weights would be packed here instead.)
        self.wo_in_features_sparsified = d_ff

        # Pack Wi0^T|Wi1^T per d_ff tile so the kernel issues one wide matmul
        # for gate+linear of each reduction step: (n_ff, d_model, 2*tff).
        self.tff = _choose_tff(d_model, d_ff, self.gen)
        n_ff = d_ff // self.tff
        wi0_blk = self.wi_0_t.reshape(d_model, n_ff, self.tff).transpose(1, 0, 2)
        wi1_blk = self.wi_1_t.reshape(d_model, n_ff, self.tff).transpose(1, 0, 2)
        self.wi_cat = jnp.concatenate([wi0_blk, wi1_blk], axis=2)

    def _active_tiles(self, mask_flat):
        """Host-side list of d_ff tiles containing any nonzero mask entry.
        Returns None when the mask is a tracer (fall back to dense streaming)."""
        try:
            m = np.asarray(jax.device_get(mask_flat))
        except Exception:
            return None
        tile_any = (m.reshape(self.d_ff // self.tff, self.tff) != 0.0).any(axis=1)
        return np.nonzero(tile_any)[0].astype(np.int32)

    def __call__(self, hidden_states, layer_neuron_mask=None):
        if self.wo_in_features_sparsified < 8:
            return jnp.zeros_like(hidden_states)

        B, S, d_model = hidden_states.shape
        assert d_model == self.d_model
        out_dtype = jnp.dtype(self.out_dtype if self.out_dtype is not None
                              else hidden_states.dtype)

        M = B * S
        tm = _choose_tm(M, d_model, self.tff, out_dtype.itemsize, self.gen)
        M_pad = _round_up(M, tm)
        vmem_limit = _vmem_limit_bytes(tm, self.tff, d_model,
                                       out_dtype.itemsize, self.gen)

        x2d = hidden_states.reshape(M, d_model).astype(self.param_dtype)
        if M_pad != M:
            x2d = jnp.pad(x2d, ((0, M_pad - M), (0, 0)))

        if layer_neuron_mask is None:
            # Static dense path: no mask stream, no per-step VPU multiply.
            out2d = _ffn_pallas_dense(x2d, self.wi_cat, self.wo_t,
                                      tm=tm, tff=self.tff,
                                      out_dtype=out_dtype, vmem_limit=vmem_limit)
        else:
            mask_flat = jnp.broadcast_to(
                jnp.asarray(layer_neuron_mask, jnp.float32).reshape(-1),
                (self.d_ff,))
            n_ff = self.d_ff // self.tff
            active = self._active_tiles(mask_flat)
            if active is None:
                # Dynamic (traced) mask: cannot compact tiles -> dense sweep.
                active_idx = jnp.arange(n_ff, dtype=jnp.int32)
            elif active.size == 0:
                return jnp.zeros((B, S, d_model), out_dtype)
            else:
                active_idx = jnp.asarray(active)
            out2d = _ffn_pallas_masked(active_idx, x2d, self.wi_cat, self.wo_t,
                                       mask_flat.reshape(1, self.d_ff),
                                       tm=tm, tff=self.tff,
                                       out_dtype=out_dtype,
                                       vmem_limit=vmem_limit)

        return out2d[:M].reshape(B, S, d_model)


def _reference(x2d, wi0_t, wi1_t, wo_t, mask_flat):
    # Pure-JAX reference mirroring the kernel's dtype choices (bf16 operands,
    # f32 math, bf16 re-cast of h before the output projection).
    x = x2d.astype(jnp.float32)
    h_gate = x @ wi0_t.astype(jnp.float32)
    h_lin = x @ wi1_t.astype(jnp.float32)
    h = _gelu_new(h_gate) * h_lin
    if mask_flat is not None:
        h = h * mask_flat.astype(jnp.float32)
    h = h.astype(wo_t.dtype).astype(jnp.float32)
    return h @ wo_t.astype(jnp.float32)


if __name__ == "__main__":
    key = jax.random.PRNGKey(0)
    k_x, k_w, k_m = jax.random.split(key, 3)

    B, S, d_model, d_ff = 2, 8, 64, 1024
    hidden_states = jax.random.normal(k_x, (B, S, d_model), jnp.float32)

    module = SparseT5DenseGatedGeluDensePallas(d_model, d_ff, k_w)
    n_ff = d_ff // module.tff

    # Mask with scattered zeros AND (when n_ff > 1) one fully-zero d_ff tile,
    # exercising both the in-kernel mask multiply and the tile-skip path.
    mask = (jax.random.uniform(k_m, (d_ff,)) > 0.3).astype(jnp.float32)
    if n_ff > 1:
        mask = mask.at[-module.tff:].set(0.0)

    out = jax.block_until_ready(module(hidden_states, mask))
    assert out.shape == hidden_states.shape
    assert out.dtype == hidden_states.dtype

    x2d_bf16 = hidden_states.reshape(B * S, d_model).astype(module.param_dtype)
    ref = _reference(x2d_bf16, module.wi_0_t, module.wi_1_t, module.wo_t,
                     mask.reshape(1, d_ff)).reshape(B, S, d_model)
    assert jnp.allclose(out, ref, atol=2e-2, rtol=2e-2), \
        float(jnp.max(jnp.abs(out - ref)))

    # dense (no-mask) path
    out2 = jax.block_until_ready(module(hidden_states))
    ref2 = _reference(x2d_bf16, module.wi_0_t, module.wi_1_t, module.wo_t,
                      None).reshape(B, S, d_model)
    assert out2.shape == hidden_states.shape
    assert jnp.allclose(out2, ref2, atol=2e-2, rtol=2e-2), \
        float(jnp.max(jnp.abs(out2 - ref2)))

    # all-zero mask -> exact zeros (no kernel launch)
    out3 = jax.block_until_ready(
        module(hidden_states, jnp.zeros((d_ff,), jnp.float32)))
    assert float(jnp.max(jnp.abs(out3))) == 0.0

    print("KERNEL_OK")
</pallas_src>

<mosaic_0001>
module attributes {stable_mosaic.version = 11 : i64} {
  func.func @_ffn_kernel_masked(%arg0: i32, %arg1: i32, %arg2: memref<1xi32, #tpu.memory_space<smem>>, %arg3: memref<128x64xbf16, #tpu.memory_space<vmem>>, %arg4: memref<1x64x1024xbf16, #tpu.memory_space<vmem>>, %arg5: memref<512x64xbf16, #tpu.memory_space<vmem>>, %arg6: memref<1x512xf32, #tpu.memory_space<vmem>>, %arg7: memref<128x64xf32, #tpu.memory_space<vmem>>, %arg8: memref<128x64xf32, #tpu.memory_space<vmem>>) attributes {dimension_semantics = [#tpu.dimension_semantics<parallel>, #tpu.dimension_semantics<arbitrary>], iteration_bounds = array<i64: 1, 1>, scalar_prefetch = 1 : i64, scratch_operands = 1 : i64, tpu.core_type = #tpu.core_type<tc>, window_params = [{transform_indices = @transform_0, window_bounds = array<i64: 128, 64>}, {transform_indices = @transform_1, window_bounds = array<i64: 1, 64, 1024>}, {transform_indices = @transform_2, window_bounds = array<i64: 512, 64>}, {transform_indices = @transform_3, window_bounds = array<i64: 1, 512>}, {transform_indices = @transform_4, window_bounds = array<i64: 128, 64>}]} {
    %c0_i32 = arith.constant 0 : i32
    %0 = arith.cmpi eq, %arg1, %c0_i32 : i32
    %1 = arith.extui %0 : i1 to i32
    %c0_i32_0 = arith.constant 0 : i32
    %2 = arith.cmpi ne, %1, %c0_i32_0 : i32
    scf.if %2 {
      %cst_20 = arith.constant 0.000000e+00 : f32
      %35 = vector.broadcast %cst_20 : f32 to vector<128x64xf32>
      %c0_21 = arith.constant 0 : index
      %c0_22 = arith.constant 0 : index
      %36 = vector.load %arg8[%c0_21, %c0_22] : memref<128x64xf32, #tpu.memory_space<vmem>>, vector<128x64xf32>
      tpu.vector_store %arg8[%c0_21, %c0_22], %35 {strides = array<i32>} : memref<128x64xf32, #tpu.memory_space<vmem>>, vector<128x64xf32>,
    } else {
    }
    %c0 = arith.constant 0 : index
    %c0_1 = arith.constant 0 : index
    %3 = vector.load %arg3[%c0, %c0_1] : memref<128x64xbf16, #tpu.memory_space<vmem>>, vector<128x64xbf16>
    %c0_2 = arith.constant 0 : index
    %c0_3 = arith.constant 0 : index
    %c0_4 = arith.constant 0 : index
    %4 = vector.load %arg4[%c0_2, %c0_3, %c0_4] : memref<1x64x1024xbf16, #tpu.memory_space<vmem>>, vector<1x64x1024xbf16>
    %5 = vector.shape_cast %4 : vector<1x64x1024xbf16> to vector<64x1024xbf16>
    %cst = arith.constant dense<0.000000e+00> : vector<128x1024xf32>
    %6 = tpu.matmul %3, %5, %cst {dimension_numbers = #tpu.dot_dimension_numbers<[1], [0], [0], [1], [0, 0, 1, 1], [], []>} : vector<128x64xbf16>, vector<64x1024xbf16>, vector<128x1024xf32> -> vector<128x1024xf32>
    %7 = vector.extract_strided_slice %6 {offsets = [0, 0], sizes = [128, 512], strides = [1, 1]} : vector<128x1024xf32> to vector<128x512xf32>
    %cst_5 = arith.constant 5.000000e-01 : f32
    %8 = vector.broadcast %cst_5 : f32 to vector<128x512xf32>
    %9 = arith.mulf %8, %7 : vector<128x512xf32>
    %cst_6 = arith.constant 4.471500e-02 : f32
    %10 = vector.broadcast %cst_6 : f32 to vector<128x512xf32>
    %11 = arith.mulf %10, %7 : vector<128x512xf32>
    %12 = arith.mulf %11, %7 : vector<128x512xf32>
    %13 = arith.mulf %12, %7 : vector<128x512xf32>
    %14 = arith.addf %7, %13 : vector<128x512xf32>
    %cst_7 = arith.constant 0.797884583 : f32
    %15 = vector.broadcast %cst_7 : f32 to vector<128x512xf32>
    %16 = arith.mulf %15, %14 : vector<128x512xf32>
    %17 = math.tanh %16 : vector<128x512xf32>
    %cst_8 = arith.constant 1.000000e+00 : f32
    %18 = vector.broadcast %cst_8 : f32 to vector<128x512xf32>
    %19 = arith.addf %18, %17 : vector<128x512xf32>
    %20 = arith.mulf %9, %19 : vector<128x512xf32>
    %21 = vector.extract_strided_slice %6 {offsets = [0, 512], sizes = [128, 512], strides = [1, 1]} : vector<128x1024xf32> to vector<128x512xf32>
    %22 = arith.mulf %20, %21 : vector<128x512xf32>
    %c0_9 = arith.constant 0 : index
    %c0_10 = arith.constant 0 : index
    %23 = vector.load %arg6[%c0_9, %c0_10] : memref<1x512xf32, #tpu.memory_space<vmem>>, vector<1x512xf32>
    %24 = vector.broadcast %23 : vector<1x512xf32> to vector<128x512xf32>
    %25 = arith.mulf %22, %24 : vector<128x512xf32>
    %c0_11 = arith.constant 0 : index
    %c0_12 = arith.constant 0 : index
    %26 = vector.load %arg8[%c0_11, %c0_12] : memref<128x64xf32, #tpu.memory_space<vmem>>, vector<128x64xf32>
    %27 = arith.truncf %25 : vector<128x512xf32> to vector<128x512xbf16>
    %c0_13 = arith.constant 0 : index
    %c0_14 = arith.constant 0 : index
    %28 = vector.load %arg5[%c0_13, %c0_14] : memref<512x64xbf16, #tpu.memory_space<vmem>>, vector<512x64xbf16>
    %cst_15 = arith.constant dense<0.000000e+00> : vector<128x64xf32>
    %29 = tpu.matmul %27, %28, %cst_15 {dimension_numbers = #tpu.dot_dimension_numbers<[1], [0], [0], [1], [0, 0, 1, 1], [], []>} : vector<128x512xbf16>, vector<512x64xbf16>, vector<128x64xf32> -> vector<128x64xf32>
    %30 = arith.addf %26, %29 : vector<128x64xf32>
    %c0_16 = arith.constant 0 : index
    %c0_17 = arith.constant 0 : index
    %31 = vector.load %arg8[%c0_16, %c0_17] : memref<128x64xf32, #tpu.memory_space<vmem>>, vector<128x64xf32>
    tpu.vector_store %arg8[%c0_16, %c0_17], %30 {strides = array<i32>} : memref<128x64xf32, #tpu.memory_space<vmem>>, vector<128x64xf32>,
    %c0_i32_18 = arith.constant 0 : i32
    %32 = arith.cmpi eq, %arg1, %c0_i32_18 : i32
    %33 = arith.extui %32 : i1 to i32
    %c0_i32_19 = arith.constant 0 : i32
    %34 = arith.cmpi ne, %33, %c0_i32_19 : i32
    scf.if %34 {
      %c0_20 = arith.constant 0 : index
      %c0_21 = arith.constant 0 : index
      %35 = vector.load %arg8[%c0_20, %c0_21] : memref<128x64xf32, #tpu.memory_space<vmem>>, vector<128x64xf32>
      %c0_22 = arith.constant 0 : index
      %c0_23 = arith.constant 0 : index
      %36 = vector.load %arg7[%c0_22, %c0_23] : memref<128x64xf32, #tpu.memory_space<vmem>>, vector<128x64xf32>
      tpu.vector_store %arg7[%c0_22, %c0_23], %35 {strides = array<i32>} : memref<128x64xf32, #tpu.memory_space<vmem>>, vector<128x64xf32>,
    } else {
    }
    return
  }
  func.func @transform_0(%arg0: i32, %arg1: i32, %arg2: memref<1xi32, #tpu.memory_space<smem>>) -> (i32, i32) {
    %c0_i32 = arith.constant 0 : i32
    %c0_i32_0 = arith.constant 0 : i32
    return %arg0, %c0_i32 : i32, i32
  }
  func.func @transform_1(%arg0: i32, %arg1: i32, %arg2: memref<1xi32, #tpu.memory_space<smem>>) -> (i32, i32, i32) {
    %0 = arith.index_cast %arg1 : i32 to index
    %1 = memref.load %arg2[%0] : memref<1xi32, #tpu.memory_space<smem>>
    %c0_i32 = arith.constant 0 : i32
    %c0_i32_0 = arith.constant 0 : i32
    %c0_i32_1 = arith.constant 0 : i32
    return %1, %c0_i32, %c0_i32_0 : i32, i32, i32
  }
  func.func @transform_2(%arg0: i32, %arg1: i32, %arg2: memref<1xi32, #tpu.memory_space<smem>>) -> (i32, i32) {
    %0 = arith.index_cast %arg1 : i32 to index
    %1 = memref.load %arg2[%0] : memref<1xi32, #tpu.memory_space<smem>>
    %c0_i32 = arith.constant 0 : i32
    %c0_i32_0 = arith.constant 0 : i32
    return %1, %c0_i32 : i32, i32
  }
  func.func @transform_3(%arg0: i32, %arg1: i32, %arg2: memref<1xi32, #tpu.memory_space<smem>>) -> (i32, i32) {
    %0 = arith.index_cast %arg1 : i32 to index
    %1 = memref.load %arg2[%0] : memref<1xi32, #tpu.memory_space<smem>>
    %c0_i32 = arith.constant 0 : i32
    %c0_i32_0 = arith.constant 0 : i32
    return %c0_i32, %1 : i32, i32
  }
  func.func @transform_4(%arg0: i32, %arg1: i32, %arg2: memref<1xi32, #tpu.memory_space<smem>>) -> (i32, i32) {
    %c0_i32 = arith.constant 0 : i32
    %c0_i32_0 = arith.constant 0 : i32
    return %arg0, %c0_i32 : i32, i32
  }
}

</mosaic_0001>

<llo_original>
// kernel: _ffn_pallas_masked.1
$region0: #{_ffn_pallas_masked.1}
  #allocation0 [shape = 'u32[]', space=smem, size = 0x4, offset = 0x4, fixed_abs, tag = 'smem constant byte address 0x4 - core index']
  #allocation1 [shape = 'u32[144,128]{1,0:T(1,128)}', space=vmem, size = 0x12000, scoped, tag = 'internal scratch']
  #allocation2 [shape = 'f32[128,64]{1,0:T(8,128)}', space=vmem, size = 0x10000, scoped, tag = 'scratch operand']
  #allocation3 [shape = 's32[1]{0}', space=sflag, size = 0x4, scoped, tag = 'scoped memory for _ffn_pallas_masked.1']
  #allocation4 [shape = 's32[1]{0:T(128)S(6)}', space=smem, size = 0x200, scoped, tag = 'prefetched SMEM operand 0']
  %s0 = inlined_call_operand.<no memory space> [shape: s32[1], index: 0, kind: input, shape index: {}]
  %s1 = inlined_call_operand.vmem [shape: bf16[128,64], index: 1, kind: input, shape index: {}]
  %s2 = inlined_call_operand.vmem [shape: bf16[2,64,1024], index: 2, kind: input, shape index: {}]
  %s3 = inlined_call_operand.vmem [shape: bf16[1024,64], index: 3, kind: input, shape index: {}]
  %s4 = inlined_call_operand.vmem [shape: f32[1,1024], index: 4, kind: input, shape index: {}]
  %s5 = inlined_call_operand.vmem [shape: f32[128,64], index: 5, kind: output, shape index: {}]
  %s6 = sld [smem:[#allocation0]]
  $region34: #{_ffn_pallas_masked.1} parent=0
    _
  %s8 = ssub.s32 1, %s6
  %s9 = scalar_select 0, %s8, %s6
  %10 = sst [smem:[#allocation4]] %s0
  // Predicated region
  $region2: #{_ffn_pallas_masked.1} parent=0 // pred_check
    _
  $region3: #{_ffn_pallas_masked.1} parent=0 // pred_check_branch
    %12 = sbr.rel (0) target = $region5
  $region4: #{_ffn_pallas_masked.1} parent=0 // pred_region
    _
  $region5: #{_ffn_pallas_masked.1} parent=0 // pred_fallthru
    _
  // Predicated region
  $region6: #{_ffn_pallas_masked.1} parent=0 // pred_check
    _
  $region7: #{_ffn_pallas_masked.1} parent=0 // pred_check_branch
    %14 = sbr.rel (0) target = $region9
  $region8: #{_ffn_pallas_masked.1} parent=0 // pred_region
    %s15 = sld [smem:[#allocation4]]
    %p16 = scmp.lt.s32.totalorder %s15, 1
    %s17 = scalar_select %p16, %s15, 1
    %s18 = smul.addr %s17, 64
    %s19 = smul.addr %s18, 4
    %s20 = scalar_lea.vmem %s2, %s19
    %s21 = sld [smem:[#allocation4]]
  $region9: #{_ffn_pallas_masked.1} parent=0 // pred_fallthru
    _
  // Predicated region
  $region10: #{_ffn_pallas_masked.1} parent=0 // pred_check
    _
  $region11: #{_ffn_pallas_masked.1} parent=0 // pred_check_branch
    %23 = sbr.rel (0) target = $region13
  $region12: #{_ffn_pallas_masked.1} parent=0 // pred_region
    %s24 = sld [smem:[#allocation4]]
    %s25 = smul.u32 64, %s24
    %p26 = scmp.lt.s32.totalorder %s25, 127
    %s27 = scalar_select %p26, %s25, 127
    %s28 = smul.addr %s27, 4
    %s29 = scalar_lea.vmem %s3, %s28
    %s30 = sld [smem:[#allocation4]]
    %s31 = smul.u32 64, %s30
  $region13: #{_ffn_pallas_masked.1} parent=0 // pred_fallthru
    _
  // Predicated region
  $region14: #{_ffn_pallas_masked.1} parent=0 // pred_check
    _
  $region15: #{_ffn_pallas_masked.1} parent=0 // pred_check_branch
    %33 = sbr.rel (0) target = $region17
  $region16: #{_ffn_pallas_masked.1} parent=0 // pred_region
    %s34 = sld [smem:[#allocation4]]
    %s35 = smul.u32 4, %s34
    %p36 = scmp.lt.s32.totalorder %s35, 7
    %s37 = scalar_select %p36, %s35, 7
    %s38 = scalar_lea.vmem %s4, %s37
    %s39 = sld [smem:[#allocation4]]
    %s40 = smul.u32 4, %s39
  $region17: #{_ffn_pallas_masked.1} parent=0 // pred_fallthru
    _
  %s41 = sld [smem:[#allocation4]]
  %p42 = scmp.lt.s32.totalorder %s41, 1
  %s43 = scalar_select %p42, %s41, 1
  %s44 = smul.addr %s43, 64
  %s45 = smul.addr %s44, 4
  %s46 = scalar_lea.vmem %s2, %s45
  %s47 = sld [smem:[#allocation4]]
  %s48 = smul.u32 64, %s47
  %p49 = scmp.lt.s32.totalorder %s48, 127
  %s50 = scalar_select %p49, %s48, 127
  %s51 = smul.addr %s50, 4
  %s52 = scalar_lea.vmem %s3, %s51
  %s53 = sld [smem:[#allocation4]]
  %s54 = smul.u32 4, %s53
  %p55 = scmp.lt.s32.totalorder %s54, 7
  %s56 = scalar_select %p55, %s54, 7
  %s57 = scalar_lea.vmem %s4, %s56
  %s58 = sld [smem:[#allocation4]]
  %p59 = scmp.lt.s32.totalorder %s58, 1
  %s60 = scalar_select %p59, %s58, 1
  %s61 = smul.addr %s60, 64
  %s62 = smul.addr %s61, 4
  %s63 = scalar_lea.vmem %s2, %s62
  %s64 = sld [smem:[#allocation4]]
  %s65 = sld [smem:[#allocation4]]
  %s66 = smul.u32 64, %s65
  %p67 = scmp.lt.s32.totalorder %s66, 127
  %s68 = scalar_select %p67, %s66, 127
  %s69 = smul.addr %s68, 4
  %s70 = scalar_lea.vmem %s3, %s69
  %s71 = sld [smem:[#allocation4]]
  %s72 = smul.u32 64, %s71
  %s73 = sld [smem:[#allocation4]]
  %s74 = smul.u32 4, %s73
  %p75 = scmp.lt.s32.totalorder %s74, 7
  %s76 = scalar_select %p75, %s74, 7
  %s77 = scalar_lea.vmem %s4, %s76
  %s78 = sld [smem:[#allocation4]]
  %s79 = smul.u32 4, %s78
  %p81 = scmp.eq.s32.totalorder 0, 0
  // Predicated region
  $region18: #{_ffn_pallas_masked.1} parent=0 // pred_check
    %p82 = pneg %p81
  $region19: #{_ffn_pallas_masked.1} parent=0 // pred_check_branch
    %84 = sbr.rel (%p82) target = $region21
  $region20: #{_ffn_pallas_masked.1} parent=0 // pred_region
    %vm85 = vcmask 523264
    %86 = vst.msk [vmem:[#allocation2] sm:$0xff] %vm85, 0.0
    %87 = vst.msk [vmem:[#allocation2 + $0x8] sm:$0xff] %vm85, 0.0
    %88 = vst.msk [vmem:[#allocation2 + $0x10] sm:$0xff] %vm85, 0.0
    %89 = vst.msk [vmem:[#allocation2 + $0x18] sm:$0xff] %vm85, 0.0
    %90 = vst.msk [vmem:[#allocation2 + $0x20] sm:$0xff] %vm85, 0.0
    %91 = vst.msk [vmem:[#allocation2 + $0x28] sm:$0xff] %vm85, 0.0
    %92 = vst.msk [vmem:[#allocation2 + $0x30] sm:$0xff] %vm85, 0.0
    %93 = vst.msk [vmem:[#allocation2 + $0x38] sm:$0xff] %vm85, 0.0
    %94 = vst.msk [vmem:[#allocation2 + $0x40] sm:$0xff] %vm85, 0.0
    %95 = vst.msk [vmem:[#allocation2 + $0x48] sm:$0xff] %vm85, 0.0
    %96 = vst.msk [vmem:[#allocation2 + $0x50] sm:$0xff] %vm85, 0.0
    %97 = vst.msk [vmem:[#allocation2 + $0x58] sm:$0xff] %vm85, 0.0
    %98 = vst.msk [vmem:[#allocation2 + $0x60] sm:$0xff] %vm85, 0.0
    %99 = vst.msk [vmem:[#allocation2 + $0x68] sm:$0xff] %vm85, 0.0
    %100 = vst.msk [vmem:[#allocation2 + $0x70] sm:$0xff] %vm85, 0.0
    %101 = vst.msk [vmem:[#allocation2 + $0x78] sm:$0xff] %vm85, 0.0
  $region21: #{_ffn_pallas_masked.1} parent=0 // pred_fallthru
    _
  %v102 = vld [vmem:[%s1] sm:$0xf]
  %v103 = vld [vmem:[%s1 + $0x4] sm:$0xf]
  %v104 = vld [vmem:[%s1 + $0x8] sm:$0xf]
  %v105 = vld [vmem:[%s1 + $0xc] sm:$0xf]
  %v106 = vld [vmem:[%s1 + $0x10] sm:$0xf]
  %v107 = vld [vmem:[%s1 + $0x14] sm:$0xf]
  %v108 = vld [vmem:[%s1 + $0x18] sm:$0xf]
  %v109 = vld [vmem:[%s1 + $0x1c] sm:$0xf]
  %v110 = vld [vmem:[%s1 + $0x20] sm:$0xf]
  %v111 = vld [vmem:[%s1 + $0x24] sm:$0xf]
  %v112 = vld [vmem:[%s1 + $0x28] sm:$0xf]
  %v113 = vld [vmem:[%s1 + $0x2c] sm:$0xf]
  %v114 = vld [vmem:[%s1 + $0x30] sm:$0xf]
  %v115 = vld [vmem:[%s1 + $0x34] sm:$0xf]
  %v116 = vld [vmem:[%s1 + $0x38] sm:$0xf]
  %v117 = vld [vmem:[%s1 + $0x3c] sm:$0xf]
  %v118 = vld [vmem:[%s63] sm:$0xff]
  %v119 = vld [vmem:[%s63 + $0x8] sm:$0xff]
  %v120 = vld [vmem:[%s63 + $0x10] sm:$0xff]
  %v121 = vld [vmem:[%s63 + $0x18] sm:$0xff]
  %v122 = vld [vmem:[%s63 + $0x20] sm:$0xff]
  %v123 = vld [vmem:[%s63 + $0x28] sm:$0xff]
  %v124 = vld [vmem:[%s63 + $0x30] sm:$0xff]
  %v125 = vld [vmem:[%s63 + $0x38] sm:$0xff]
  %v126 = vld [vmem:[%s63 + $0x40] sm:$0xff]
  %v127 = vld [vmem:[%s63 + $0x48] sm:$0xff]
  %v128 = vld [vmem:[%s63 + $0x50] sm:$0xff]
  %v129 = vld [vmem:[%s63 + $0x58] sm:$0xff]
  %v130 = vld [vmem:[%s63 + $0x60] sm:$0xff]
  %v131 = vld [vmem:[%s63 + $0x68] sm:$0xff]
  %v132 = vld [vmem:[%s63 + $0x70] sm:$0xff]
  %v133 = vld [vmem:[%s63 + $0x78] sm:$0xff]
  %v134 = vld [vmem:[%s63 + $0x80] sm:$0xff]
  %v135 = vld [vmem:[%s63 + $0x88] sm:$0xff]
  %v136 = vld [vmem:[%s63 + $0x90] sm:$0xff]
  %v137 = vld [vmem:[%s63 + $0x98] sm:$0xff]
  %v138 = vld [vmem:[%s63 + $0xa0] sm:$0xff]
  %v139 = vld [vmem:[%s63 + $0xa8] sm:$0xff]
  %v140 = vld [vmem:[%s63 + $0xb0] sm:$0xff]
  %v141 = vld [vmem:[%s63 + $0xb8] sm:$0xff]
  %v142 = vld [vmem:[%s63 + $0xc0] sm:$0xff]
  %v143 = vld [vmem:[%s63 + $0xc8] sm:$0xff]
  %v144 = vld [vmem:[%s63 + $0xd0] sm:$0xff]
  %v145 = vld [vmem:[%s63 + $0xd8] sm:$0xff]
  %v146 = vld [vmem:[%s63 + $0xe0] sm:$0xff]
  %v147 = vld [vmem:[%s63 + $0xe8] sm:$0xff]
  %v148 = vld [vmem:[%s63 + $0xf0] sm:$0xff]
  %v149 = vld [vmem:[%s63 + $0xf8] sm:$0xff]
  %v166 = vunpack.c.l.b16 %v102
  %v167 = vunpack.c.l.b16 %v103
  %v168 = vunpack.c.l.b16 %v104
  %v169 = vunpack.c.l.b16 %v105
  %v170 = vunpack.c.l.b16 %v106
  %v171 = vunpack.c.l.b16 %v107
  %v172 = vunpack.c.l.b16 %v108
  %v173 = vunpack.c.l.b16 %v109
  %v174 = vunpack.c.l.b16 %v110
  %v175 = vunpack.c.l.b16 %v111
  %v176 = vunpack.c.l.b16 %v112
  %v177 = vunpack.c.l.b16 %v113
  %v178 = vunpack.c.l.b16 %v114
  %v179 = vunpack.c.l.b16 %v115
  %v180 = vunpack.c.l.b16 %v116
  %v181 = vunpack.c.l.b16 %v117
  %v182 = vpack.c.b16 %v167, %v166
  %v183 = vpack.c.b16 %v169, %v168
  %v184 = vpack.c.b16 %v171, %v170
  %v185 = vpack.c.b16 %v173, %v172
  %v186 = vpack.c.b16 %v175, %v174
  %v187 = vpack.c.b16 %v177, %v176
  %v188 = vpack.c.b16 %v179, %v178
  %v189 = vpack.c.b16 %v181, %v180
  %v222 = vunpack.c.l.b16 %v118
  %v223 = vunpack.c.h.b16 %v118
  %v224 = vunpack.c.l.b16 %v119
  %v225 = vunpack.c.h.b16 %v119
  %v226 = vunpack.c.l.b16 %v120
  %v227 = vunpack.c.h.b16 %v120
  %v228 = vunpack.c.l.b16 %v121
  %v229 = vunpack.c.h.b16 %v121
  %v230 = vunpack.c.l.b16 %v122
  %v231 = vunpack.c.h.b16 %v122
  %v232 = vunpack.c.l.b16 %v123
  %v233 = vunpack.c.h.b16 %v123
  %v234 = vunpack.c.l.b16 %v124
  %v235 = vunpack.c.h.b16 %v124
  %v236 = vunpack.c.l.b16 %v125
  %v237 = vunpack.c.h.b16 %v125
  %v238 = vunpack.c.l.b16 %v126
  %v239 = vunpack.c.h.b16 %v126
  %v240 = vunpack.c.l.b16 %v127
  %v241 = vunpack.c.h.b16 %v127
  %v242 = vunpack.c.l.b16 %v128
  %v243 = vunpack.c.h.b16 %v128
  %v244 = vunpack.c.l.b16 %v129
  %v245 = vunpack.c.h.b16 %v129
  %v246 = vunpack.c.l.b16 %v130
  %v247 = vunpack.c.h.b16 %v130
  %v248 = vunpack.c.l.b16 %v131
  %v249 = vunpack.c.h.b16 %v131
  %v250 = vunpack.c.l.b16 %v132
  %v251 = vunpack.c.h.b16 %v132
  %v252 = vunpack.c.l.b16 %v133
  %v253 = vunpack.c.h.b16 %v133
  %v254 = vunpack.c.l.b16 %v134
  %v255 = vunpack.c.h.b16 %v134
  %v256 = vunpack.c.l.b16 %v135
  %v257 = vunpack.c.h.b16 %v135
  %v258 = vunpack.c.l.b16 %v136
  %v259 = vunpack.c.h.b16 %v136
  %v260 = vunpack.c.l.b16 %v137
  %v261 = vunpack.c.h.b16 %v137
  %v262 = vunpack.c.l.b16 %v138
  %v263 = vunpack.c.h.b16 %v138
  %v264 = vunpack.c.l.b16 %v139
  %v265 = vunpack.c.h.b16 %v139
  %v266 = vunpack.c.l.b16 %v140
  %v267 = vunpack.c.h.b16 %v140
  %v268 = vunpack.c.l.b16 %v141
  %v269 = vunpack.c.h.b16 %v141
  %v270 = vunpack.c.l.b16 %v142
  %v271 = vunpack.c.h.b16 %v142
  %v272 = vunpack.c.l.b16 %v143
  %v273 = vunpack.c.h.b16 %v143
  %v274 = vunpack.c.l.b16 %v144
  %v275 = vunpack.c.h.b16 %v144
  %v276 = vunpack.c.l.b16 %v145
  %v277 = vunpack.c.h.b16 %v145
  %v278 = vunpack.c.l.b16 %v146
  %v279 = vunpack.c.h.b16 %v146
  %v280 = vunpack.c.l.b16 %v147
  %v281 = vunpack.c.h.b16 %v147
  %v282 = vunpack.c.l.b16 %v148
  %v283 = vunpack.c.h.b16 %v148
  %v284 = vunpack.c.l.b16 %v149
  %v285 = vunpack.c.h.b16 %v149
  %v286 = vpack.c.b16 %v230, %v222
  %v287 = vpack.c.b16 %v231, %v223
  %v288 = vpack.c.b16 %v232, %v224
  %v289 = vpack.c.b16 %v233, %v225
  %v290 = vpack.c.b16 %v234, %v226
  %v291 = vpack.c.b16 %v235, %v227
  %v292 = vpack.c.b16 %v236, %v228
  %v293 = vpack.c.b16 %v237, %v229
  %v294 = vpack.c.b16 %v246, %v238
  %v295 = vpack.c.b16 %v247, %v239
  %v296 = vpack.c.b16 %v248, %v240
  %v297 = vpack.c.b16 %v249, %v241
  %v298 = vpack.c.b16 %v250, %v242
  %v299 = vpack.c.b16 %v251, %v243
  %v300 = vpack.c.b16 %v252, %v244
  %v301 = vpack.c.b16 %v253, %v245
  %v302 = vpack.c.b16 %v262, %v254
  %v303 = vpack.c.b16 %v263, %v255
  %v304 = vpack.c.b16 %v264, %v256
  %v305 = vpack.c.b16 %v265, %v257
  %v306 = vpack.c.b16 %v266, %v258
  %v307 = vpack.c.b16 %v267, %v259
  %v308 = vpack.c.b16 %v268, %v260
  %v309 = vpack.c.b16 %v269, %v261
  %v310 = vpack.c.b16 %v278, %v270
  %v311 = vpack.c.b16 %v279, %v271
  %v312 = vpack.c.b16 %v280, %v272
  %v313 = vpack.c.b16 %v281, %v273
  %v314 = vpack.c.b16 %v282, %v274
  %v315 = vpack.c.b16 %v283, %v275
  %v316 = vpack.c.b16 %v284, %v276
  %v317 = vpack.c.b16 %v285, %v277
  %vm350 = vcmask 523264
  %v352 = vsel %vm350, %v182, 0
  %v355 = vsel %vm350, %v183, 0
  %v358 = vsel %vm350, %v184, 0
  %v361 = vsel %vm350, %v185, 0
  %v364 = vsel %vm350, %v186, 0
  %v367 = vsel %vm350, %v187, 0
  %v370 = vsel %vm350, %v188, 0
  %v373 = vsel %vm350, %v189, 0
  %375 = vmatprep.subr.bf16.mxu0 %v287
  %376 = vmatpush1.bf16.msra.mxu0 %v286
  %377 = vmatprep.subr.bf16.mxu0 %v295
  %378 = vmatpush1.bf16.msra.mxu0 %v294
  %379 = vmatprep.subr.bf16.mxu0 %v303
  %380 = vmatpush1.bf16.msra.mxu0 %v302
  %381 = vmatprep.subr.bf16.mxu0 %v311
  %382 = vmatpush1.bf16.msra.mxu0 %v310
  %383 = vmatprep.subr.bf16.mxu0 0
  %384 = vmatpush1.bf16.msra.mxu0 0
  %385 = vmatprep.subr.bf16.mxu0 0
  %386 = vmatpush1.bf16.msra.mxu0 0
  %387 = vmatprep.subr.bf16.mxu0 0
  %388 = vmatpush1.bf16.msra.mxu0 0
  %389 = vmatprep.subr.bf16.mxu0 0
  %390 = vmatpush1.bf16.msra.mxu0 0
  %391 = vmatprep.subr.bf16.mxu0 0
  %392 = vmatpush1.bf16.msra.mxu0 0
  %393 = vmatprep.subr.bf16.mxu0 0
  %394 = vmatpush1.bf16.msra.mxu0 0
  %395 = vmatprep.subr.bf16.mxu0 0
  %396 = vmatpush1.bf16.msra.mxu0 0
  %397 = vmatprep.subr.bf16.mxu0 0
  %398 = vmatpush1.bf16.msra.mxu0 0
  %399 = vmatprep.subr.bf16.mxu0 0
  %400 = vmatpush1.bf16.msra.mxu0 0
  %401 = vmatprep.subr.bf16.mxu0 0
  %402 = vmatpush1.bf16.msra.mxu0 0
  %403 = vmatprep.subr.bf16.mxu0 0
  %404 = vmatpush1.bf16.msra.mxu0 0
  %405 = vmatprep.subr.bf16.mxu0 0
  %406 = vmatpush1.bf16.msra.mxu0 0
  %407 = vmatprep.mubr.bf16.mxu0 0
  %408 = vmatmul.mubr.bf16.gmra.mrb[0].mxu0 %v352
  %v409 = vpop.f32.mrb[0].mxu0
  %v410 = vadd.f32 0.0, %v409
  %v411 = vpop.f32.mrb[0].mxu0
  %v412 = vadd.f32 0.0, %v411
  %v413 = vpop.f32.mrb[0].mxu0
  %v414 = vadd.f32 0.0, %v413
  %v415 = vpop.f32.mrb[0].mxu0
  %v416 = vadd.f32 0.0, %v415
  %417 = vmatprep.mubr.bf16.mxu0 0
  %418 = vmatmul.mubr.bf16.gmra.mrb[0].mxu0 %v355
  %v419 = vpop.f32.mrb[0].mxu0
  %v420 = vadd.f32 0.0, %v419
  %v421 = vpop.f32.mrb[0].mxu0
  %v422 = vadd.f32 0.0, %v421
  %v423 = vpop.f32.mrb[0].mxu0
  %v424 = vadd.f32 0.0, %v423
  %v425 = vpop.f32.mrb[0].mxu0
  %v426 = vadd.f32 0.0, %v425
  %427 = vmatprep.mubr.bf16.mxu0 0
  %428 = vmatmul.mubr.bf16.gmra.mrb[0].mxu0 %v358
  %v429 = vpop.f32.mrb[0].mxu0
  %v430 = vadd.f32 0.0, %v429
  %v431 = vpop.f32.mrb[0].mxu0
  %v432 = vadd.f32 0.0, %v431
  %v433 = vpop.f32.mrb[0].mxu0
  %v434 = vadd.f32 0.0, %v433
  %v435 = vpop.f32.mrb[0].mxu0
  %v436 = vadd.f32 0.0, %v435
  %437 = vmatprep.mubr.bf16.mxu0 0
  %438 = vmatmul.mubr.bf16.gmra.mrb[0].mxu0 %v361
  %v439 = vpop.f32.mrb[0].mxu0
  %v440 = vadd.f32 0.0, %v439
  %v441 = vpop.f32.mrb[0].mxu0
  %v442 = vadd.f32 0.0, %v441
  %v443 = vpop.f32.mrb[0].mxu0
  %v444 = vadd.f32 0.0, %v443
  %v445 = vpop.f32.mrb[0].mxu0
  %v446 = vadd.f32 0.0, %v445
  %447 = vmatprep.mubr.bf16.mxu0 0
  %448 = vmatmul.mubr.bf16.gmra.mrb[0].mxu0 %v364
  %v449 = vpop.f32.mrb[0].mxu0
  %v450 = vadd.f32 0.0, %v449
  %v451 = vpop.f32.mrb[0].mxu0
  %v452 = vadd.f32 0.0, %v451
  %v453 = vpop.f32.mrb[0].mxu0
  %v454 = vadd.f32 0.0, %v453
  %v455 = vpop.f32.mrb[0].mxu0
  %v456 = vadd.f32 0.0, %v455
  %457 = vmatprep.mubr.bf16.mxu0 0
  %458 = vmatmul.mubr.bf16.gmra.mrb[0].mxu0 %v367
  %v459 = vpop.f32.mrb[0].mxu0
  %v460 = vadd.f32 0.0, %v459
  %v461 = vpop.f32.mrb[0].mxu0
  %v462 = vadd.f32 0.0, %v461
  %v463 = vpop.f32.mrb[0].mxu0
  %v464 = vadd.f32 0.0, %v463
  %v465 = vpop.f32.mrb[0].mxu0
  %v466 = vadd.f32 0.0, %v465
  %467 = vmatprep.mubr.bf16.mxu0 0
  %468 = vmatmul.mubr.bf16.gmra.mrb[0].mxu0 %v370
  %v469 = vpop.f32.mrb[0].mxu0
  %v470 = vadd.f32 0.0, %v469
  %v471 = vpop.f32.mrb[0].mxu0
  %v472 = vadd.f32 0.0, %v471
  %v473 = vpop.f32.mrb[0].mxu0
  %v474 = vadd.f32 0.0, %v473
  %v475 = vpop.f32.mrb[0].mxu0
  %v476 = vadd.f32 0.0, %v475
  %477 = vmatprep.mubr.bf16.mxu0 0
  %478 = vmatmul.mubr.bf16.gmra.mrb[0].mxu0 %v373
  %v479 = vpop.f32.mrb[0].mxu0
  %v480 = vadd.f32 0.0, %v479
  %v481 = vpop.f32.mrb[0].mxu0
  %v482 = vadd.f32 0.0, %v481
  %v483 = vpop.f32.mrb[0].mxu0
  %v484 = vadd.f32 0.0, %v483
  %v485 = vpop.f32.mrb[0].mxu0
  %v486 = vadd.f32 0.0, %v485
  %487 = vdwg.mxu0
  %488 = vmatprep.subr.bf16.mxu0 %v289
  %489 = vmatpush1.bf16.msra.mxu0 %v288
  %490 = vmatprep.subr.bf16.mxu0 %v297
  %491 = vmatpush1.bf16.msra.mxu0 %v296
  %492 = vmatprep.subr.bf16.mxu0 %v305
  %493 = vmatpush1.bf16.msra.mxu0 %v304
  %494 = vmatprep.subr.bf16.mxu0 %v313
  %495 = vmatpush1.bf16.msra.mxu0 %v312
  %496 = vmatprep.subr.bf16.mxu0 0
  %497 = vmatpush1.bf16.msra.mxu0 0
  %498 = vmatprep.subr.bf16.mxu0 0
  %499 = vmatpush1.bf16.msra.mxu0 0
  %500 = vmatprep.subr.bf16.mxu0 0
  %501 = vmatpush1.bf16.msra.mxu0 0
  %502 = vmatprep.subr.bf16.mxu0 0
  %503 = vmatpush1.bf16.msra.mxu0 0
  %504 = vmatprep.subr.bf16.mxu0 0
  %505 = vmatpush1.bf16.msra.mxu0 0
  %506 = vmatprep.subr.bf16.mxu0 0
  %507 = vmatpush1.bf16.msra.mxu0 0
  %508 = vmatprep.subr.bf16.mxu0 0
  %509 = vmatpush1.bf16.msra.mxu0 0
  %510 = vmatprep.subr.bf16.mxu0 0
  %511 = vmatpush1.bf16.msra.mxu0 0
  %512 = vmatprep.subr.bf16.mxu0 0
  %513 = vmatpush1.bf16.msra.mxu0 0
  %514 = vmatprep.subr.bf16.mxu0 0
  %515 = vmatpush1.bf16.msra.mxu0 0
  %516 = vmatprep.subr.bf16.mxu0 0
  %517 = vmatpush1.bf16.msra.mxu0 0
  %518 = vmatprep.subr.bf16.mxu0 0
  %519 = vmatpush1.bf16.msra.mxu0 0
  %520 = vmatprep.mubr.bf16.mxu0 0
  %521 = vmatmul.mubr.bf16.gmra.mrb[0].mxu0 %v352
  %v522 = vpop.f32.mrb[0].mxu0
  %v523 = vadd.f32 0.0, %v522
  %v524 = vpop.f32.mrb[0].mxu0
  %v525 = vadd.f32 0.0, %v524
  %v526 = vpop.f32.mrb[0].mxu0
  %v527 = vadd.f32 0.0, %v526
  %v528 = vpop.f32.mrb[0].mxu0
  %v529 = vadd.f32 0.0, %v528
  %530 = vmatprep.mubr.bf16.mxu0 0
  %531 = vmatmul.mubr.bf16.gmra.mrb[0].mxu0 %v355
  %v532 = vpop.f32.mrb[0].mxu0
  %v533 = vadd.f32 0.0, %v532
  %v534 = vpop.f32.mrb[0].mxu0
  %v535 = vadd.f32 0.0, %v534
  %v536 = vpop.f32.mrb[0].mxu0
  %v537 = vadd.f32 0.0, %v536
  %v538 = vpop.f32.mrb[0].mxu0
  %v539 = vadd.f32 0.0, %v538
  %540 = vmatprep.mubr.bf16.mxu0 0
  %541 = vmatmul.mubr.bf16.gmra.mrb[0].mxu0 %v358
  %v542 = vpop.f32.mrb[0].mxu0
  %v543 = vadd.f32 0.0, %v542
  %v544 = vpop.f32.mrb[0].mxu0
  %v545 = vadd.f32 0.0, %v544
  %v546 = vpop.f32.mrb[0].mxu0
  %v547 = vadd.f32 0.0, %v546
  %v548 = vpop.f32.mrb[0].mxu0
  %v549 = vadd.f32 0.0, %v548
  %550 = vmatprep.mubr.bf16.mxu0 0
  %551 = vmatmul.mubr.bf16.gmra.mrb[0].mxu0 %v361
  %v552 = vpop.f32.mrb[0].mxu0
  %v553 = vadd.f32 0.0, %v552
  %v554 = vpop.f32.mrb[0].mxu0
  %v555 = vadd.f32 0.0, %v554
  %v556 = vpop.f32.mrb[0].mxu0
  %v557 = vadd.f32 0.0, %v556
  %v558 = vpop.f32.mrb[0].mxu0
  %v559 = vadd.f32 0.0, %v558
  %560 = vmatprep.mubr.bf16.mxu0 0
  %561 = vmatmul.mubr.bf16.gmra.mrb[0].mxu0 %v364
  %v562 = vpop.f32.mrb[0].mxu0
  %v563 = vadd.f32 0.0, %v562
  %v564 = vpop.f32.mrb[0].mxu0
  %v565 = vadd.f32 0.0, %v564
  %v566 = vpop.f32.mrb[0].mxu0
  %v567 = vadd.f32 0.0, %v566
  %v568 = vpop.f32.mrb[0].mxu0
  %v569 = vadd.f32 0.0, %v568
  %570 = vmatprep.mubr.bf16.mxu0 0
  %571 = vmatmul.mubr.bf16.gmra.mrb[0].mxu0 %v367
  %v572 = vpop.f32.mrb[0].mxu0
  %v573 = vadd.f32 0.0, %v572
  %v574 = vpop.f32.mrb[0].mxu0
  %v575 = vadd.f32 0.0, %v574
  %v576 = vpop.f32.mrb[0].mxu0
  %v577 = vadd.f32 0.0, %v576
  %v578 = vpop.f32.mrb[0].mxu0
  %v579 = vadd.f32 0.0, %v578
  %580 = vmatprep.mubr.bf16.mxu0 0
  %581 = vmatmul.mubr.bf16.gmra.mrb[0].mxu0 %v370
  %v582 = vpop.f32.mrb[0].mxu0
  %v583 = vadd.f32 0.0, %v582
  %v584 = vpop.f32.mrb[0].mxu0
  %v585 = vadd.f32 0.0, %v584
  %v586 = vpop.f32.mrb[0].mxu0
  %v587 = vadd.f32 0.0, %v586
  %v588 = vpop.f32.mrb[0].mxu0
  %v589 = vadd.f32 0.0, %v588
  %590 = vmatprep.mubr.bf16.mxu0 0
  %591 = vmatmul.mubr.bf16.gmra.mrb[0].mxu0 %v373
  %v592 = vpop.f32.mrb[0].mxu0
  %v593 = vadd.f32 0.0, %v592
  %v594 = vpop.f32.mrb[0].mxu0
  %v595 = vadd.f32 0.0, %v594
  %v596 = vpop.f32.mrb[0].mxu0
  %v597 = vadd.f32 0.0, %v596
  %v598 = vpop.f32.mrb[0].mxu0
  %v599 = vadd.f32 0.0, %v598
  %600 = vdwg.mxu0
  %601 = vmatprep.subr.bf16.mxu0 %v291
  %602 = vmatpush1.bf16.msra.mxu0 %v290
  %603 = vmatprep.subr.bf16.mxu0 %v299
  %604 = vmatpush1.bf16.msra.mxu0 %v298
  %605 = vmatprep.subr.bf16.mxu0 %v307
  %606 = vmatpush1.bf16.msra.mxu0 %v306
  %607 = vmatprep.subr.bf16.mxu0 %v315
  %608 = vmatpush1.bf16.msra.mxu0 %v314
  %609 = vmatprep.subr.bf16.mxu0 0
  %610 = vmatpush1.bf16.msra.mxu0 0
  %611 = vmatprep.subr.bf16.mxu0 0
  %612 = vmatpush1.bf16.msra.mxu0 0
  %613 = vmatprep.subr.bf16.mxu0 0
  %614 = vmatpush1.bf16.msra.mxu0 0
  %615 = vmatprep.subr.bf16.mxu0 0
  %616 = vmatpush1.bf16.msra.mxu0 0
  %617 = vmatprep.subr.bf16.mxu0 0
  %618 = vmatpush1.bf16.msra.mxu0 0
  %619 = vmatprep.subr.bf16.mxu0 0
  %620 = vmatpush1.bf16.msra.mxu0 0
  %621 = vmatprep.subr.bf16.mxu0 0
  %622 = vmatpush1.bf16.msra.mxu0 0
  %623 = vmatprep.subr.bf16.mxu0 0
  %624 = vmatpush1.bf16.msra.mxu0 0
  %625 = vmatprep.subr.bf16.mxu0 0
  %626 = vmatpush1.bf16.msra.mxu0 0
  %627 = vmatprep.subr.bf16.mxu0 0
  %628 = vmatpush1.bf16.msra.mxu0 0
  %629 = vmatprep.subr.bf16.mxu0 0
  %630 = vmatpush1.bf16.msra.mxu0 0
  %631 = vmatprep.subr.bf16.mxu0 0
  %632 = vmatpush1.bf16.msra.mxu0 0
  %633 = vmatprep.mubr.bf16.mxu0 0
  %634 = vmatmul.mubr.bf16.gmra.mrb[0].mxu0 %v352
  %v635 = vpop.f32.mrb[0].mxu0
  %v636 = vadd.f32 0.0, %v635
  %v637 = vpop.f32.mrb[0].mxu0
  %v638 = vadd.f32 0.0, %v637
  %v639 = vpop.f32.mrb[0].mxu0
  %v640 = vadd.f32 0.0, %v639
  %v641 = vpop.f32.mrb[0].mxu0
  %v642 = vadd.f32 0.0, %v641
  %643 = vmatprep.mubr.bf16.mxu0 0
  %644 = vmatmul.mubr.bf16.gmra.mrb[0].mxu0 %v355
  %v645 = vpop.f32.mrb[0].mxu0
  %v646 = vadd.f32 0.0, %v645
  %v647 = vpop.f32.mrb[0].mxu0
  %v648 = vadd.f32 0.0, %v647
  %v649 = vpop.f32.mrb[0].mxu0
  %v650 = vadd.f32 0.0, %v649
  %v651 = vpop.f32.mrb[0].mxu0
  %v652 = vadd.f32 0.0, %v651
  %653 = vmatprep.mubr.bf16.mxu0 0
  %654 = vmatmul.mubr.bf16.gmra.mrb[0].mxu0 %v358
  %v655 = vpop.f32.mrb[0].mxu0
  %v656 = vadd.f32 0.0, %v655
  %v657 = vpop.f32.mrb[0].mxu0
  %v658 = vadd.f32 0.0, %v657
  %v659 = vpop.f32.mrb[0].mxu0
  %v660 = vadd.f32 0.0, %v659
  %v661 = vpop.f32.mrb[0].mxu0
  %v662 = vadd.f32 0.0, %v661
  %663 = vmatprep.mubr.bf16.mxu0 0
  %664 = vmatmul.mubr.bf16.gmra.mrb[0].mxu0 %v361
  %v665 = vpop.f32.mrb[0].mxu0
  %v666 = vadd.f32 0.0, %v665
  %v667 = vpop.f32.mrb[0].mxu0
  %v668 = vadd.f32 0.0, %v667
  %v669 = vpop.f32.mrb[0].mxu0
  %v670 = vadd.f32 0.0, %v669
  %v671 = vpop.f32.mrb[0].mxu0
  %v672 = vadd.f32 0.0, %v671
  %673 = vmatprep.mubr.bf16.mxu0 0
  %674 = vmatmul.mubr.bf16.gmra.mrb[0].mxu0 %v364
  %v675 = vpop.f32.mrb[0].mxu0
  %v676 = vadd.f32 0.0, %v675
  %v677 = vpop.f32.mrb[0].mxu0
  %v678 = vadd.f32 0.0, %v677
  %v679 = vpop.f32.mrb[0].mxu0
  %v680 = vadd.f32 0.0, %v679
  %v681 = vpop.f32.mrb[0].mxu0
  %v682 = vadd.f32 0.0, %v681
  %683 = vmatprep.mubr.bf16.mxu0 0
  %684 = vmatmul.mubr.bf16.gmra.mrb[0].mxu0 %v367
  %v685 = vpop.f32.mrb[0].mxu0
  %v686 = vadd.f32 0.0, %v685
  %v687 = vpop.f32.mrb[0].mxu0
  %v688 = vadd.f32 0.0, %v687
  %v689 = vpop.f32.mrb[0].mxu0
  %v690 = vadd.f32 0.0, %v689
  %v691 = vpop.f32.mrb[0].mxu0
  %v692 = vadd.f32 0.0, %v691
  %693 = vmatprep.mubr.bf16.mxu0 0
  %694 = vmatmul.mubr.bf16.gmra.mrb[0].mxu0 %v370
  %v695 = vpop.f32.mrb[0].mxu0
  %v696 = vadd.f32 0.0, %v695
  %v697 = vpop.f32.mrb[0].mxu0
  %v698 = vadd.f32 0.0, %v697
  %v699 = vpop.f32.mrb[0].mxu0
  %v700 = vadd.f32 0.0, %v699
  %v701 = vpop.f32.mrb[0].mxu0
  %v702 = vadd.f32 0.0, %v701
  %703 = vmatprep.mubr.bf16.mxu0 0
  %704 = vmatmul.mubr.bf16.gmra.mrb[0].mxu0 %v373
  %v705 = vpop.f32.mrb[0].mxu0
  %v706 = vadd.f32 0.0, %v705
  %v707 = vpop.f32.mrb[0].mxu0
  %v708 = vadd.f32 0.0, %v707
  %v709 = vpop.f32.mrb[0].mxu0
  %v710 = vadd.f32 0.0, %v709
  %v711 = vpop.f32.mrb[0].mxu0
  %v712 = vadd.f32 0.0, %v711
  %713 = vdwg.mxu0
  %714 = vmatprep.subr.bf16.mxu0 %v293
  %715 = vmatpush1.bf16.msra.mxu0 %v292
  %716 = vmatprep.subr.bf16.mxu0 %v301
  %717 = vmatpush1.bf16.msra.mxu0 %v300
  %718 = vmatprep.subr.bf16.mxu0 %v309
  %719 = vmatpush1.bf16.msra.mxu0 %v308
  %720 = vmatprep.subr.bf16.mxu0 %v317
  %721 = vmatpush1.bf16.msra.mxu0 %v316
  %722 = vmatprep.subr.bf16.mxu0 0
  %723 = vmatpush1.bf16.msra.mxu0 0
  %724 = vmatprep.subr.bf16.mxu0 0
  %725 = vmatpush1.bf16.msra.mxu0 0
  %726 = vmatprep.subr.bf16.mxu0 0
  %727 = vmatpush1.bf16.msra.mxu0 0
  %728 = vmatprep.subr.bf16.mxu0 0
  %729 = vmatpush1.bf16.msra.mxu0 0
  %730 = vmatprep.subr.bf16.mxu0 0
  %731 = vmatpush1.bf16.msra.mxu0 0
  %732 = vmatprep.subr.bf16.mxu0 0
  %733 = vmatpush1.bf16.msra.mxu0 0
  %734 = vmatprep.subr.bf16.mxu0 0
  %735 = vmatpush1.bf16.msra.mxu0 0
  %736 = vmatprep.subr.bf16.mxu0 0
  %737 = vmatpush1.bf16.msra.mxu0 0
  %738 = vmatprep.subr.bf16.mxu0 0
  %739 = vmatpush1.bf16.msra.mxu0 0
  %740 = vmatprep.subr.bf16.mxu0 0
  %741 = vmatpush1.bf16.msra.mxu0 0
  %742 = vmatprep.subr.bf16.mxu0 0
  %743 = vmatpush1.bf16.msra.mxu0 0
  %744 = vmatprep.subr.bf16.mxu0 0
  %745 = vmatpush1.bf16.msra.mxu0 0
  %746 = vmatprep.mubr.bf16.mxu0 0
  %747 = vmatmul.mubr.bf16.gmra.mrb[0].mxu0 %v352
  %v748 = vpop.f32.mrb[0].mxu0
  %v749 = vadd.f32 0.0, %v748
  %v750 = vpop.f32.mrb[0].mxu0
  %v751 = vadd.f32 0.0, %v750
  %v752 = vpop.f32.mrb[0].mxu0
  %v753 = vadd.f32 0.0, %v752
  %v754 = vpop.f32.mrb[0].mxu0
  %v755 = vadd.f32 0.0, %v754
  %756 = vmatprep.mubr.bf16.mxu0 0
  %757 = vmatmul.mubr.bf16.gmra.mrb[0].mxu0 %v355
  %v758 = vpop.f32.mrb[0].mxu0
  %v759 = vadd.f32 0.0, %v758
  %v760 = vpop.f32.mrb[0].mxu0
  %v761 = vadd.f32 0.0, %v760
  %v762 = vpop.f32.mrb[0].mxu0
  %v763 = vadd.f32 0.0, %v762
  %v764 = vpop.f32.mrb[0].mxu0
  %v765 = vadd.f32 0.0, %v764
  %766 = vmatprep.mubr.bf16.mxu0 0
  %767 = vmatmul.mubr.bf16.gmra.mrb[0].mxu0 %v358
  %v768 = vpop.f32.mrb[0].mxu0
  %v769 = vadd.f32 0.0, %v768
  %v770 = vpop.f32.mrb[0].mxu0
  %v771 = vadd.f32 0.0, %v770
  %v772 = vpop.f32.mrb[0].mxu0
  %v773 = vadd.f32 0.0, %v772
  %v774 = vpop.f32.mrb[0].mxu0
  %v775 = vadd.f32 0.0, %v774
  %776 = vmatprep.mubr.bf16.mxu0 0
  %777 = vmatmul.mubr.bf16.gmra.mrb[0].mxu0 %v361
  %v778 = vpop.f32.mrb[0].mxu0
  %v779 = vadd.f32 0.0, %v778
  %v780 = vpop.f32.mrb[0].mxu0
  %v781 = vadd.f32 0.0, %v780
  %v782 = vpop.f32.mrb[0].mxu0
  %v783 = vadd.f32 0.0, %v782
  %v784 = vpop.f32.mrb[0].mxu0
  %v785 = vadd.f32 0.0, %v784
  %786 = vmatprep.mubr.bf16.mxu0 0
  %787 = vmatmul.mubr.bf16.gmra.mrb[0].mxu0 %v364
  %v788 = vpop.f32.mrb[0].mxu0
  %v789 = vadd.f32 0.0, %v788
  %v790 = vpop.f32.mrb[0].mxu0
  %v791 = vadd.f32 0.0, %v790
  %v792 = vpop.f32.mrb[0].mxu0
  %v793 = vadd.f32 0.0, %v792
  %v794 = vpop.f32.mrb[0].mxu0
  %v795 = vadd.f32 0.0, %v794
  %796 = vmatprep.mubr.bf16.mxu0 0
  %797 = vmatmul.mubr.bf16.gmra.mrb[0].mxu0 %v367
  %v798 = vpop.f32.mrb[0].mxu0
  %v799 = vadd.f32 0.0, %v798
  %v800 = vpop.f32.mrb[0].mxu0
  %v801 = vadd.f32 0.0, %v800
  %v802 = vpop.f32.mrb[0].mxu0
  %v803 = vadd.f32 0.0, %v802
  %v804 = vpop.f32.mrb[0].mxu0
  %v805 = vadd.f32 0.0, %v804
  %806 = vmatprep.mubr.bf16.mxu0 0
  %807 = vmatmul.mubr.bf16.gmra.mrb[0].mxu0 %v370
  %v808 = vpop.f32.mrb[0].mxu0
  %v809 = vadd.f32 0.0, %v808
  %v810 = vpop.f32.mrb[0].mxu0
  %v811 = vadd.f32 0.0, %v810
  %v812 = vpop.f32.mrb[0].mxu0
  %v813 = vadd.f32 0.0, %v812
  %v814 = vpop.f32.mrb[0].mxu0
  %v815 = vadd.f32 0.0, %v814
  %816 = vmatprep.mubr.bf16.mxu0 0
  %817 = vmatmul.mubr.bf16.gmra.mrb[0].mxu0 %v373
  %v818 = vpop.f32.mrb[0].mxu0
  %v819 = vadd.f32 0.0, %v818
  %v820 = vpop.f32.mrb[0].mxu0
  %v821 = vadd.f32 0.0, %v820
  %v822 = vpop.f32.mrb[0].mxu0
  %v823 = vadd.f32 0.0, %v822
  %v824 = vpop.f32.mrb[0].mxu0
  %v825 = vadd.f32 0.0, %v824
  %826 = vdwg.mxu0
  %v827 = vmul.f32 %v410, 0.5
  %v828 = vmul.f32 %v412, 0.5
  %v829 = vmul.f32 %v523, 0.5
  %v830 = vmul.f32 %v525, 0.5
  %v831 = vmul.f32 %v414, 0.5
  %v832 = vmul.f32 %v416, 0.5
  %v833 = vmul.f32 %v527, 0.5
  %v834 = vmul.f32 %v529, 0.5
  %v835 = vmul.f32 %v420, 0.5
  %v836 = vmul.f32 %v422, 0.5
  %v837 = vmul.f32 %v533, 0.5
  %v838 = vmul.f32 %v535, 0.5
  %v839 = vmul.f32 %v424, 0.5
  %v840 = vmul.f32 %v426, 0.5
  %v841 = vmul.f32 %v537, 0.5
  %v842 = vmul.f32 %v539, 0.5
  %v843 = vmul.f32 %v430, 0.5
  %v844 = vmul.f32 %v432, 0.5
  %v845 = vmul.f32 %v543, 0.5
  %v846 = vmul.f32 %v545, 0.5
  %v847 = vmul.f32 %v434, 0.5
  %v848 = vmul.f32 %v436, 0.5
  %v849 = vmul.f32 %v547, 0.5
  %v850 = vmul.f32 %v549, 0.5
  %v851 = vmul.f32 %v440, 0.5
  %v852 = vmul.f32 %v442, 0.5
  %v853 = vmul.f32 %v553, 0.5
  %v854 = vmul.f32 %v555, 0.5
  %v855 = vmul.f32 %v444, 0.5
  %v856 = vmul.f32 %v446, 0.5
  %v857 = vmul.f32 %v557, 0.5
  %v858 = vmul.f32 %v559, 0.5
  %v859 = vmul.f32 %v450, 0.5
  %v860 = vmul.f32 %v452, 0.5
  %v861 = vmul.f32 %v563, 0.5
  %v862 = vmul.f32 %v565, 0.5
  %v863 = vmul.f32 %v454, 0.5
  %v864 = vmul.f32 %v456, 0.5
  %v865 = vmul.f32 %v567, 0.5
  %v866 = vmul.f32 %v569, 0.5
  %v867 = vmul.f32 %v460, 0.5
  %v868 = vmul.f32 %v462, 0.5
  %v869 = vmul.f32 %v573, 0.5
  %v870 = vmul.f32 %v575, 0.5
  %v871 = vmul.f32 %v464, 0.5
  %v872 = vmul.f32 %v466, 0.5
  %v873 = vmul.f32 %v577, 0.5
  %v874 = vmul.f32 %v579, 0.5
  %v875 = vmul.f32 %v470, 0.5
  %v876 = vmul.f32 %v472, 0.5
  %v877 = vmul.f32 %v583, 0.5
  %v878 = vmul.f32 %v585, 0.5
  %v879 = vmul.f32 %v474, 0.5
  %v880 = vmul.f32 %v476, 0.5
  %v881 = vmul.f32 %v587, 0.5
  %v882 = vmul.f32 %v589, 0.5
  %v883 = vmul.f32 %v480, 0.5
  %v884 = vmul.f32 %v482, 0.5
  %v885 = vmul.f32 %v593, 0.5
  %v886 = vmul.f32 %v595, 0.5
  %v887 = vmul.f32 %v484, 0.5
  %v888 = vmul.f32 %v486, 0.5
  %v889 = vmul.f32 %v597, 0.5
  %v890 = vmul.f32 %v599, 0.5
  %v891 = vmul.f32 %v410, 0.044715
  %v892 = vmul.f32 %v412, 0.044715
  %v893 = vmul.f32 %v523, 0.044715
  %v894 = vmul.f32 %v525, 0.044715
  %v895 = vmul.f32 %v414, 0.044715
  %v896 = vmul.f32 %v416, 0.044715
  %v897 = vmul.f32 %v527, 0.044715
  %v898 = vmul.f32 %v529, 0.044715
  %v899 = vmul.f32 %v420, 0.044715
  %v900 = vmul.f32 %v422, 0.044715
  %v901 = vmul.f32 %v533, 0.044715
  %v902 = vmul.f32 %v535, 0.044715
  %v903 = vmul.f32 %v424, 0.044715
  %v904 = vmul.f32 %v426, 0.044715
  %v905 = vmul.f32 %v537, 0.044715
  %v906 = vmul.f32 %v539, 0.044715
  %v907 = vmul.f32 %v430, 0.044715
  %v908 = vmul.f32 %v432, 0.044715
  %v909 = vmul.f32 %v543, 0.044715
  %v910 = vmul.f32 %v545, 0.044715
  %v911 = vmul.f32 %v434, 0.044715
  %v912 = vmul.f32 %v436, 0.044715
  %v913 = vmul.f32 %v547, 0.044715
  %v914 = vmul.f32 %v549, 0.044715
  %v915 = vmul.f32 %v440, 0.044715
  %v916 = vmul.f32 %v442, 0.044715
  %v917 = vmul.f32 %v553, 0.044715
  %v918 = vmul.f32 %v555, 0.044715
  %v919 = vmul.f32 %v444, 0.044715
  %v920 = vmul.f32 %v446, 0.044715
  %v921 = vmul.f32 %v557, 0.044715
  %v922 = vmul.f32 %v559, 0.044715
  %v923 = vmul.f32 %v450, 0.044715
  %v924 = vmul.f32 %v452, 0.044715
  %v925 = vmul.f32 %v563, 0.044715
  %v926 = vmul.f32 %v565, 0.044715
  %v927 = vmul.f32 %v454, 0.044715
  %v928 = vmul.f32 %v456, 0.044715
  %v929 = vmul.f32 %v567, 0.044715
  %v930 = vmul.f32 %v569, 0.044715
  %v931 = vmul.f32 %v460, 0.044715
  %v932 = vmul.f32 %v462, 0.044715
  %v933 = vmul.f32 %v573, 0.044715
  %v934 = vmul.f32 %v575, 0.044715
  %v935 = vmul.f32 %v464, 0.044715
  %v936 = vmul.f32 %v466, 0.044715
  %v937 = vmul.f32 %v577, 0.044715
  %v938 = vmul.f32 %v579, 0.044715
  %v939 = vmul.f32 %v470, 0.044715
  %v940 = vmul.f32 %v472, 0.044715
  %v941 = vmul.f32 %v583, 0.044715
  %v942 = vmul.f32 %v585, 0.044715
  %v943 = vmul.f32 %v474, 0.044715
  %v944 = vmul.f32 %v476, 0.044715
  %v945 = vmul.f32 %v587, 0.044715
  %v946 = vmul.f32 %v589, 0.044715
  %v947 = vmul.f32 %v480, 0.044715
  %v948 = vmul.f32 %v482, 0.044715
  %v949 = vmul.f32 %v593, 0.044715
  %v950 = vmul.f32 %v595, 0.044715
  %v951 = vmul.f32 %v484, 0.044715
  %v952 = vmul.f32 %v486, 0.044715
  %v953 = vmul.f32 %v597, 0.044715
  %v954 = vmul.f32 %v599, 0.044715
  %v955 = vmul.f32 %v891, %v410
  %v956 = vmul.f32 %v892, %v412
  %v957 = vmul.f32 %v893, %v523
  %v958 = vmul.f32 %v894, %v525
  %v959 = vmul.f32 %v895, %v414
  %v960 = vmul.f32 %v896, %v416
  %v961 = vmul.f32 %v897, %v527
  %v962 = vmul.f32 %v898, %v529
  %v963 = vmul.f32 %v899, %v420
  %v964 = vmul.f32 %v900, %v422
  %v965 = vmul.f32 %v901, %v533
  %v966 = vmul.f32 %v902, %v535
  %v967 = vmul.f32 %v903, %v424
  %v968 = vmul.f32 %v904, %v426
  %v969 = vmul.f32 %v905, %v537
  %v970 = vmul.f32 %v906, %v539
  %v971 = vmul.f32 %v907, %v430
  %v972 = vmul.f32 %v908, %v432
  %v973 = vmul.f32 %v909, %v543
  %v974 = vmul.f32 %v910, %v545
  %v975 = vmul.f32 %v911, %v434
  %v976 = vmul.f32 %v912, %v436
  %v977 = vmul.f32 %v913, %v547
  %v978 = vmul.f32 %v914, %v549
  %v979 = vmul.f32 %v915, %v440
  %v980 = vmul.f32 %v916, %v442
  %v981 = vmul.f32 %v917, %v553
  %v982 = vmul.f32 %v918, %v555
  %v983 = vmul.f32 %v919, %v444
  %v984 = vmul.f32 %v920, %v446
  %v985 = vmul.f32 %v921, %v557
  %v986 = vmul.f32 %v922, %v559
  %v987 = vmul.f32 %v923, %v450
  %v988 = vmul.f32 %v924, %v452
  %v989 = vmul.f32 %v925, %v563
  %v990 = vmul.f32 %v926, %v565
  %v991 = vmul.f32 %v927, %v454
  %v992 = vmul.f32 %v928, %v456
  %v993 = vmul.f32 %v929, %v567
  %v994 = vmul.f32 %v930, %v569
  %v995 = vmul.f32 %v931, %v460
  %v996 = vmul.f32 %v932, %v462
  %v997 = vmul.f32 %v933, %v573
  %v998 = vmul.f32 %v934, %v575
  %v999 = vmul.f32 %v935, %v464
  %v1000 = vmul.f32 %v936, %v466
  %v1001 = vmul.f32 %v937, %v577
  %v1002 = vmul.f32 %v938, %v579
  %v1003 = vmul.f32 %v939, %v470
  %v1004 = vmul.f32 %v940, %v472
  %v1005 = vmul.f32 %v941, %v583
  %v1006 = vmul.f32 %v942, %v585
  %v1007 = vmul.f32 %v943, %v474
  %v1008 = vmul.f32 %v944, %v476
  %v1009 = vmul.f32 %v945, %v587
  %v1010 = vmul.f32 %v946, %v589
  %v1011 = vmul.f32 %v947, %v480
  %v1012 = vmul.f32 %v948, %v482
  %v1013 = vmul.f32 %v949, %v593
  %v1014 = vmul.f32 %v950, %v595
  %v1015 = vmul.f32 %v951, %v484
  %v1016 = vmul.f32 %v952, %v486
  %v1017 = vmul.f32 %v953, %v597
  %v1018 = vmul.f32 %v954, %v599
  %v1019 = vmul.f32 %v955, %v410
  %v1020 = vmul.f32 %v956, %v412
  %v1021 = vmul.f32 %v957, %v523
  %v1022 = vmul.f32 %v958, %v525
  %v1023 = vmul.f32 %v959, %v414
  %v1024 = vmul.f32 %v960, %v416
  %v1025 = vmul.f32 %v961, %v527
  %v1026 = vmul.f32 %v962, %v529
  %v1027 = vmul.f32 %v963, %v420
  %v1028 = vmul.f32 %v964, %v422
  %v1029 = vmul.f32 %v965, %v533
  %v1030 = vmul.f32 %v966, %v535
  %v1031 = vmul.f32 %v967, %v424
  %v1032 = vmul.f32 %v968, %v426
  %v1033 = vmul.f32 %v969, %v537
  %v1034 = vmul.f32 %v970, %v539
  %v1035 = vmul.f32 %v971, %v430
  %v1036 = vmul.f32 %v972, %v432
  %v1037 = vmul.f32 %v973, %v543
  %v1038 = vmul.f32 %v974, %v545
  %v1039 = vmul.f32 %v975, %v434
  %v1040 = vmul.f32 %v976, %v436
  %v1041 = vmul.f32 %v977, %v547
  %v1042 = vmul.f32 %v978, %v549
  %v1043 = vmul.f32 %v979, %v440
  %v1044 = vmul.f32 %v980, %v442
  %v1045 = vmul.f32 %v981, %v553
  %v1046 = vmul.f32 %v982, %v555
  %v1047 = vmul.f32 %v983, %v444
  %v1048 = vmul.f32 %v984, %v446
  %v1049 = vmul.f32 %v985, %v557
  %v1050 = vmul.f32 %v986, %v559
  %v1051 = vmul.f32 %v987, %v450
  %v1052 = vmul.f32 %v988, %v452
  %v1053 = vmul.f32 %v989, %v563
  %v1054 = vmul.f32 %v990, %v565
  %v1055 = vmul.f32 %v991, %v454
  %v1056 = vmul.f32 %v992, %v456
  %v1057 = vmul.f32 %v993, %v567
  %v1058 = vmul.f32 %v994, %v569
  %v1059 = vmul.f32 %v995, %v460
  %v1060 = vmul.f32 %v996, %v462
  %v1061 = vmul.f32 %v997, %v573
  %v1062 = vmul.f32 %v998, %v575
  %v1063 = vmul.f32 %v999, %v464
  %v1064 = vmul.f32 %v1000, %v466
  %v1065 = vmul.f32 %v1001, %v577
  %v1066 = vmul.f32 %v1002, %v579
  %v1067 = vmul.f32 %v1003, %v470
  %v1068 = vmul.f32 %v1004, %v472
  %v1069 = vmul.f32 %v1005, %v583
  %v1070 = vmul.f32 %v1006, %v585
  %v1071 = vmul.f32 %v1007, %v474
  %v1072 = vmul.f32 %v1008, %v476
  %v1073 = vmul.f32 %v1009, %v587
  %v1074 = vmul.f32 %v1010, %v589
  %v1075 = vmul.f32 %v1011, %v480
  %v1076 = vmul.f32 %v1012, %v482
  %v1077 = vmul.f32 %v1013, %v593
  %v1078 = vmul.f32 %v1014, %v595
  %v1079 = vmul.f32 %v1015, %v484
  %v1080 = vmul.f32 %v1016, %v486
  %v1081 = vmul.f32 %v1017, %v597
  %v1082 = vmul.f32 %v1018, %v599
  %v1083 = vadd.f32 %v410, %v1019
  %v1084 = vadd.f32 %v412, %v1020
  %v1085 = vadd.f32 %v523, %v1021
  %v1086 = vadd.f32 %v525, %v1022
  %v1087 = vadd.f32 %v414, %v1023
  %v1088 = vadd.f32 %v416, %v1024
  %v1089 = vadd.f32 %v527, %v1025
  %v1090 = vadd.f32 %v529, %v1026
  %v1091 = vadd.f32 %v420, %v1027
  %v1092 = vadd.f32 %v422, %v1028
  %v1093 = vadd.f32 %v533, %v1029
  %v1094 = vadd.f32 %v535, %v1030
  %v1095 = vadd.f32 %v424, %v1031
  %v1096 = vadd.f32 %v426, %v1032
  %v1097 = vadd.f32 %v537, %v1033
  %v1098 = vadd.f32 %v539, %v1034
  %v1099 = vadd.f32 %v430, %v1035
  %v1100 = vadd.f32 %v432, %v1036
  %v1101 = vadd.f32 %v543, %v1037
  %v1102 = vadd.f32 %v545, %v1038
  %v1103 = vadd.f32 %v434, %v1039
  %v1104 = vadd.f32 %v436, %v1040
  %v1105 = vadd.f32 %v547, %v1041
  %v1106 = vadd.f32 %v549, %v1042
  %v1107 = vadd.f32 %v440, %v1043
  %v1108 = vadd.f32 %v442, %v1044
  %v1109 = vadd.f32 %v553, %v1045
  %v1110 = vadd.f32 %v555, %v1046
  %v1111 = vadd.f32 %v444, %v1047
  %v1112 = vadd.f32 %v446, %v1048
  %v1113 = vadd.f32 %v557, %v1049
  %v1114 = vadd.f32 %v559, %v1050
  %v1115 = vadd.f32 %v450, %v1051
  %v1116 = vadd.f32 %v452, %v1052
  %v1117 = vadd.f32 %v563, %v1053
  %v1118 = vadd.f32 %v565, %v1054
  %v1119 = vadd.f32 %v454, %v1055
  %v1120 = vadd.f32 %v456, %v1056
  %v1121 = vadd.f32 %v567, %v1057
  %v1122 = vadd.f32 %v569, %v1058
  %v1123 = vadd.f32 %v460, %v1059
  %v1124 = vadd.f32 %v462, %v1060
  %v1125 = vadd.f32 %v573, %v1061
  %v1126 = vadd.f32 %v575, %v1062
  %v1127 = vadd.f32 %v464, %v1063
  %v1128 = vadd.f32 %v466, %v1064
  %v1129 = vadd.f32 %v577, %v1065
  %v1130 = vadd.f32 %v579, %v1066
  %v1131 = vadd.f32 %v470, %v1067
  %v1132 = vadd.f32 %v472, %v1068
  %v1133 = vadd.f32 %v583, %v1069
  %v1134 = vadd.f32 %v585, %v1070
  %v1135 = vadd.f32 %v474, %v1071
  %v1136 = vadd.f32 %v476, %v1072
  %v1137 = vadd.f32 %v587, %v1073
  %v1138 = vadd.f32 %v589, %v1074
  %v1139 = vadd.f32 %v480, %v1075
  %v1140 = vadd.f32 %v482, %v1076
  %v1141 = vadd.f32 %v593, %v1077
  %v1142 = vadd.f32 %v595, %v1078
  %v1143 = vadd.f32 %v484, %v1079
  %v1144 = vadd.f32 %v486, %v1080
  %v1145 = vadd.f32 %v597, %v1081
  %v1146 = vadd.f32 %v599, %v1082
  %v1147 = vmul.f32 %v1083, 0.7978846
  %v1148 = vmul.f32 %v1084, 0.7978846
  %v1149 = vmul.f32 %v1085, 0.7978846
  %v1150 = vmul.f32 %v1086, 0.7978846
  %v1151 = vmul.f32 %v1087, 0.7978846
  %v1152 = vmul.f32 %v1088, 0.7978846
  %v1153 = vmul.f32 %v1089, 0.7978846
  %v1154 = vmul.f32 %v1090, 0.7978846
  %v1155 = vmul.f32 %v1091, 0.7978846
  %v1156 = vmul.f32 %v1092, 0.7978846
  %v1157 = vmul.f32 %v1093, 0.7978846
  %v1158 = vmul.f32 %v1094, 0.7978846
  %v1159 = vmul.f32 %v1095, 0.7978846
  %v1160 = vmul.f32 %v1096, 0.7978846
  %v1161 = vmul.f32 %v1097, 0.7978846
  %v1162 = vmul.f32 %v1098, 0.7978846
  %v1163 = vmul.f32 %v1099, 0.7978846
  %v1164 = vmul.f32 %v1100, 0.7978846
  %v1165 = vmul.f32 %v1101, 0.7978846
  %v1166 = vmul.f32 %v1102, 0.7978846
  %v1167 = vmul.f32 %v1103, 0.7978846
  %v1168 = vmul.f32 %v1104, 0.7978846
  %v1169 = vmul.f32 %v1105, 0.7978846
  %v1170 = vmul.f32 %v1106, 0.7978846
  %v1171 = vmul.f32 %v1107, 0.7978846
  %v1172 = vmul.f32 %v1108, 0.7978846
  %v1173 = vmul.f32 %v1109, 0.7978846
  %v1174 = vmul.f32 %v1110, 0.7978846
  %v1175 = vmul.f32 %v1111, 0.7978846
  %v1176 = vmul.f32 %v1112, 0.7978846
  %v1177 = vmul.f32 %v1113, 0.7978846
  %v1178 = vmul.f32 %v1114, 0.7978846
  %v1179 = vmul.f32 %v1115, 0.7978846
  %v1180 = vmul.f32 %v1116, 0.7978846
  %v1181 = vmul.f32 %v1117, 0.7978846
  %v1182 = vmul.f32 %v1118, 0.7978846
  %v1183 = vmul.f32 %v1119, 0.7978846
  %v1184 = vmul.f32 %v1120, 0.7978846
  %v1185 = vmul.f32 %v1121, 0.7978846
  %v1186 = vmul.f32 %v1122, 0.7978846
  %v1187 = vmul.f32 %v1123, 0.7978846
  %v1188 = vmul.f32 %v1124, 0.7978846
  %v1189 = vmul.f32 %v1125, 0.7978846
  %v1190 = vmul.f32 %v1126, 0.7978846
  %v1191 = vmul.f32 %v1127, 0.7978846
  %v1192 = vmul.f32 %v1128, 0.7978846
  %v1193 = vmul.f32 %v1129, 0.7978846
  %v1194 = vmul.f32 %v1130, 0.7978846
  %v1195 = vmul.f32 %v1131, 0.7978846
  %v1196 = vmul.f32 %v1132, 0.7978846
  %v1197 = vmul.f32 %v1133, 0.7978846
  %v1198 = vmul.f32 %v1134, 0.7978846
  %v1199 = vmul.f32 %v1135, 0.7978846
  %v1200 = vmul.f32 %v1136, 0.7978846
  %v1201 = vmul.f32 %v1137, 0.7978846
  %v1202 = vmul.f32 %v1138, 0.7978846
  %v1203 = vmul.f32 %v1139, 0.7978846
  %v1204 = vmul.f32 %v1140, 0.7978846
  %v1205 = vmul.f32 %v1141, 0.7978846
  %v1206 = vmul.f32 %v1142, 0.7978846
  %v1207 = vmul.f32 %v1143, 0.7978846
  %v1208 = vmul.f32 %v1144, 0.7978846
  %v1209 = vmul.f32 %v1145, 0.7978846
  %v1210 = vmul.f32 %v1146, 0.7978846
  %v1211 = vtanh.pop %v1147
  %v1212 = vtanh.pop %v1148
  %v1213 = vtanh.pop %v1149
  %v1214 = vtanh.pop %v1150
  %v1215 = vtanh.pop %v1151
  %v1216 = vtanh.pop %v1152
  %v1217 = vtanh.pop %v1153
  %v1218 = vtanh.pop %v1154
  %v1219 = vtanh.pop %v1155
  %v1220 = vtanh.pop %v1156
  %v1221 = vtanh.pop %v1157
  %v1222 = vtanh.pop %v1158
  %v1223 = vtanh.pop %v1159
  %v1224 = vtanh.pop %v1160
  %v1225 = vtanh.pop %v1161
  %v1226 = vtanh.pop %v1162
  %v1227 = vtanh.pop %v1163
  %v1228 = vtanh.pop %v1164
  %v1229 = vtanh.pop %v1165
  %v1230 = vtanh.pop %v1166
  %v1231 = vtanh.pop %v1167
  %v1232 = vtanh.pop %v1168
  %v1233 = vtanh.pop %v1169
  %v1234 = vtanh.pop %v1170
  %v1235 = vtanh.pop %v1171
  %v1236 = vtanh.pop %v1172
  %v1237 = vtanh.pop %v1173
  %v1238 = vtanh.pop %v1174
  %v1239 = vtanh.pop %v1175
  %v1240 = vtanh.pop %v1176
  %v1241 = vtanh.pop %v1177
  %v1242 = vtanh.pop %v1178
  %v1243 = vtanh.pop %v1179
  %v1244 = vtanh.pop %v1180
  %v1245 = vtanh.pop %v1181
  %v1246 = vtanh.pop %v1182
  %v1247 = vtanh.pop %v1183
  %v1248 = vtanh.pop %v1184
  %v1249 = vtanh.pop %v1185
  %v1250 = vtanh.pop %v1186
  %v1251 = vtanh.pop %v1187
  %v1252 = vtanh.pop %v1188
  %v1253 = vtanh.pop %v1189
  %v1254 = vtanh.pop %v1190
  %v1255 = vtanh.pop %v1191
  %v1256 = vtanh.pop %v1192
  %v1257 = vtanh.pop %v1193
  %v1258 = vtanh.pop %v1194
  %v1259 = vtanh.pop %v1195
  %v1260 = vtanh.pop %v1196
  %v1261 = vtanh.pop %v1197
  %v1262 = vtanh.pop %v1198
  %v1263 = vtanh.pop %v1199
  %v1264 = vtanh.pop %v1200
  %v1265 = vtanh.pop %v1201
  %v1266 = vtanh.pop %v1202
  %v1267 = vtanh.pop %v1203
  %v1268 = vtanh.pop %v1204
  %v1269 = vtanh.pop %v1205
  %v1270 = vtanh.pop %v1206
  %v1271 = vtanh.pop %v1207
  %v1272 = vtanh.pop %v1208
  %v1273 = vtanh.pop %v1209
  %v1274 = vtanh.pop %v1210
  %v1275 = vadd.f32 %v1211, 1.0
  %v1276 = vadd.f32 %v1212, 1.0
  %v1277 = vadd.f32 %v1213, 1.0
  %v1278 = vadd.f32 %v1214, 1.0
  %v1279 = vadd.f32 %v1215, 1.0
  %v1280 = vadd.f32 %v1216, 1.0
  %v1281 = vadd.f32 %v1217, 1.0
  %v1282 = vadd.f32 %v1218, 1.0
  %v1283 = vadd.f32 %v1219, 1.0
  %v1284 = vadd.f32 %v1220, 1.0
  %v1285 = vadd.f32 %v1221, 1.0
  %v1286 = vadd.f32 %v1222, 1.0
  %v1287 = vadd.f32 %v1223, 1.0
  %v1288 = vadd.f32 %v1224, 1.0
  %v1289 = vadd.f32 %v1225, 1.0
  %v1290 = vadd.f32 %v1226, 1.0
  %v1291 = vadd.f32 %v1227, 1.0
  %v1292 = vadd.f32 %v1228, 1.0
  %v1293 = vadd.f32 %v1229, 1.0
  %v1294 = vadd.f32 %v1230, 1.0
  %v1295 = vadd.f32 %v1231, 1.0
  %v1296 = vadd.f32 %v1232, 1.0
  %v1297 = vadd.f32 %v1233, 1.0
  %v1298 = vadd.f32 %v1234, 1.0
  %v1299 = vadd.f32 %v1235, 1.0
  %v1300 = vadd.f32 %v1236, 1.0
  %v1301 = vadd.f32 %v1237, 1.0
  %v1302 = vadd.f32 %v1238, 1.0
  %v1303 = vadd.f32 %v1239, 1.0
  %v1304 = vadd.f32 %v1240, 1.0
  %v1305 = vadd.f32 %v1241, 1.0
  %v1306 = vadd.f32 %v1242, 1.0
  %v1307 = vadd.f32 %v1243, 1.0
  %v1308 = vadd.f32 %v1244, 1.0
  %v1309 = vadd.f32 %v1245, 1.0
  %v1310 = vadd.f32 %v1246, 1.0
  %v1311 = vadd.f32 %v1247, 1.0
  %v1312 = vadd.f32 %v1248, 1.0
  %v1313 = vadd.f32 %v1249, 1.0
  %v1314 = vadd.f32 %v1250, 1.0
  %v1315 = vadd.f32 %v1251, 1.0
  %v1316 = vadd.f32 %v1252, 1.0
  %v1317 = vadd.f32 %v1253, 1.0
  %v1318 = vadd.f32 %v1254, 1.0
  %v1319 = vadd.f32 %v1255, 1.0
  %v1320 = vadd.f32 %v1256, 1.0
  %v1321 = vadd.f32 %v1257, 1.0
  %v1322 = vadd.f32 %v1258, 1.0
  %v1323 = vadd.f32 %v1259, 1.0
  %v1324 = vadd.f32 %v1260, 1.0
  %v1325 = vadd.f32 %v1261, 1.0
  %v1326 = vadd.f32 %v1262, 1.0
  %v1327 = vadd.f32 %v1263, 1.0
  %v1328 = vadd.f32 %v1264, 1.0
  %v1329 = vadd.f32 %v1265, 1.0
  %v1330 = vadd.f32 %v1266, 1.0
  %v1331 = vadd.f32 %v1267, 1.0
  %v1332 = vadd.f32 %v1268, 1.0
  %v1333 = vadd.f32 %v1269, 1.0
  %v1334 = vadd.f32 %v1270, 1.0
  %v1335 = vadd.f32 %v1271, 1.0
  %v1336 = vadd.f32 %v1272, 1.0
  %v1337 = vadd.f32 %v1273, 1.0
  %v1338 = vadd.f32 %v1274, 1.0
  %v1339 = vmul.f32 %v827, %v1275
  %v1340 = vmul.f32 %v828, %v1276
  %v1341 = vmul.f32 %v829, %v1277
  %v1342 = vmul.f32 %v830, %v1278
  %v1343 = vmul.f32 %v831, %v1279
  %v1344 = vmul.f32 %v832, %v1280
  %v1345 = vmul.f32 %v833, %v1281
  %v1346 = vmul.f32 %v834, %v1282
  %v1347 = vmul.f32 %v835, %v1283
  %v1348 = vmul.f32 %v836, %v1284
  %v1349 = vmul.f32 %v837, %v1285
  %v1350 = vmul.f32 %v838, %v1286
  %v1351 = vmul.f32 %v839, %v1287
  %v1352 = vmul.f32 %v840, %v1288
  %v1353 = vmul.f32 %v841, %v1289
  %v1354 = vmul.f32 %v842, %v1290
  %v1355 = vmul.f32 %v843, %v1291
  %v1356 = vmul.f32 %v844, %v1292
  %v1357 = vmul.f32 %v845, %v1293
  %v1358 = vmul.f32 %v846, %v1294
  %v1359 = vmul.f32 %v847, %v1295
  %v1360 = vmul.f32 %v848, %v1296
  %v1361 = vmul.f32 %v849, %v1297
  %v1362 = vmul.f32 %v850, %v1298
  %v1363 = vmul.f32 %v851, %v1299
  %v1364 = vmul.f32 %v852, %v1300
  %v1365 = vmul.f32 %v853, %v1301
  %v1366 = vmul.f32 %v854, %v1302
  %v1367 = vmul.f32 %v855, %v1303
  %v1368 = vmul.f32 %v856, %v1304
  %v1369 = vmul.f32 %v857, %v1305
  %v1370 = vmul.f32 %v858, %v1306
  %v1371 = vmul.f32 %v859, %v1307
  %v1372 = vmul.f32 %v860, %v1308
  %v1373 = vmul.f32 %v861, %v1309
  %v1374 = vmul.f32 %v862, %v1310
  %v1375 = vmul.f32 %v863, %v1311
  %v1376 = vmul.f32 %v864, %v1312
  %v1377 = vmul.f32 %v865, %v1313
  %v1378 = vmul.f32 %v866, %v1314
  %v1379 = vmul.f32 %v867, %v1315
  %v1380 = vmul.f32 %v868, %v1316
  %v1381 = vmul.f32 %v869, %v1317
  %v1382 = vmul.f32 %v870, %v1318
  %v1383 = vmul.f32 %v871, %v1319
  %v1384 = vmul.f32 %v872, %v1320
  %v1385 = vmul.f32 %v873, %v1321
  %v1386 = vmul.f32 %v874, %v1322
  %v1387 = vmul.f32 %v875, %v1323
  %v1388 = vmul.f32 %v876, %v1324
  %v1389 = vmul.f32 %v877, %v1325
  %v1390 = vmul.f32 %v878, %v1326
  %v1391 = vmul.f32 %v879, %v1327
  %v1392 = vmul.f32 %v880, %v1328
  %v1393 = vmul.f32 %v881, %v1329
  %v1394 = vmul.f32 %v882, %v1330
  %v1395 = vmul.f32 %v883, %v1331
  %v1396 = vmul.f32 %v884, %v1332
  %v1397 = vmul.f32 %v885, %v1333
  %v1398 = vmul.f32 %v886, %v1334
  %v1399 = vmul.f32 %v887, %v1335
  %v1400 = vmul.f32 %v888, %v1336
  %v1401 = vmul.f32 %v889, %v1337
  %v1402 = vmul.f32 %v890, %v1338
  %v1403 = vmul.f32 %v1339, %v636
  %v1404 = vmul.f32 %v1340, %v638
  %v1405 = vmul.f32 %v1341, %v749
  %v1406 = vmul.f32 %v1342, %v751
  %v1407 = vmul.f32 %v1343, %v640
  %v1408 = vmul.f32 %v1344, %v642
  %v1409 = vmul.f32 %v1345, %v753
  %v1410 = vmul.f32 %v1346, %v755
  %v1411 = vmul.f32 %v1347, %v646
  %v1412 = vmul.f32 %v1348, %v648
  %v1413 = vmul.f32 %v1349, %v759
  %v1414 = vmul.f32 %v1350, %v761
  %v1415 = vmul.f32 %v1351, %v650
  %v1416 = vmul.f32 %v1352, %v652
  %v1417 = vmul.f32 %v1353, %v763
  %v1418 = vmul.f32 %v1354, %v765
  %v1419 = vmul.f32 %v1355, %v656
  %v1420 = vmul.f32 %v1356, %v658
  %v1421 = vmul.f32 %v1357, %v769
  %v1422 = vmul.f32 %v1358, %v771
  %v1423 = vmul.f32 %v1359, %v660
  %v1424 = vmul.f32 %v1360, %v662
  %v1425 = vmul.f32 %v1361, %v773
  %v1426 = vmul.f32 %v1362, %v775
  %v1427 = vmul.f32 %v1363, %v666
  %v1428 = vmul.f32 %v1364, %v668
  %v1429 = vmul.f32 %v1365, %v779
  %v1430 = vmul.f32 %v1366, %v781
  %v1431 = vmul.f32 %v1367, %v670
  %v1432 = vmul.f32 %v1368, %v672
  %v1433 = vmul.f32 %v1369, %v783
  %v1434 = vmul.f32 %v1370, %v785
  %v1435 = vmul.f32 %v1371, %v676
  %v1436 = vmul.f32 %v1372, %v678
  %v1437 = vmul.f32 %v1373, %v789
  %v1438 = vmul.f32 %v1374, %v791
  %v1439 = vmul.f32 %v1375, %v680
  %v1440 = vmul.f32 %v1376, %v682
  %v1441 = vmul.f32 %v1377, %v793
  %v1442 = vmul.f32 %v1378, %v795
  %v1443 = vmul.f32 %v1379, %v686
  %v1444 = vmul.f32 %v1380, %v688
  %v1445 = vmul.f32 %v1381, %v799
  %v1446 = vmul.f32 %v1382, %v801
  %v1447 = vmul.f32 %v1383, %v690
  %v1448 = vmul.f32 %v1384, %v692
  %v1449 = vmul.f32 %v1385, %v803
  %v1450 = vmul.f32 %v1386, %v805
  %v1451 = vmul.f32 %v1387, %v696
  %v1452 = vmul.f32 %v1388, %v698
  %v1453 = vmul.f32 %v1389, %v809
  %v1454 = vmul.f32 %v1390, %v811
  %v1455 = vmul.f32 %v1391, %v700
  %v1456 = vmul.f32 %v1392, %v702
  %v1457 = vmul.f32 %v1393, %v813
  %v1458 = vmul.f32 %v1394, %v815
  %v1459 = vmul.f32 %v1395, %v706
  %v1460 = vmul.f32 %v1396, %v708
  %v1461 = vmul.f32 %v1397, %v819
  %v1462 = vmul.f32 %v1398, %v821
  %v1463 = vmul.f32 %v1399, %v710
  %v1464 = vmul.f32 %v1400, %v712
  %v1465 = vmul.f32 %v1401, %v823
  %v1466 = vmul.f32 %v1402, %v825
  %v1467 = vld [vmem:[%s77] sm:$0xf]
  %v1469 = vlaneseq
  %v1470 = vshrl.u32 %v1469, 7
  %v1471 = vsub.s32 0, %v1470
  %v1472 = vrot.slane %v1467, %v1471
  %v1473 = vlaneseq
  %v1474 = vshrl.u32 %v1473, 7
  %v1475 = vsub.s32 1, %v1474
  %v1476 = vrot.slane %v1467, %v1475
  %v1477 = vlaneseq
  %v1478 = vshrl.u32 %v1477, 7
  %v1479 = vsub.s32 2, %v1478
  %v1480 = vrot.slane %v1467, %v1479
  %v1481 = vlaneseq
  %v1482 = vshrl.u32 %v1481, 7
  %v1483 = vsub.s32 3, %v1482
  %v1484 = vrot.slane %v1467, %v1483
  %v1489 = vmul.f32 %v1403, %v1472
  %v1490 = vmul.f32 %v1404, %v1476
  %v1491 = vmul.f32 %v1405, %v1480
  %v1492 = vmul.f32 %v1406, %v1484
  %v1493 = vmul.f32 %v1407, %v1472
  %v1494 = vmul.f32 %v1408, %v1476
  %v1495 = vmul.f32 %v1409, %v1480
  %v1496 = vmul.f32 %v1410, %v1484
  %v1497 = vmul.f32 %v1411, %v1472
  %v1498 = vmul.f32 %v1412, %v1476
  %v1499 = vmul.f32 %v1413, %v1480
  %v1500 = vmul.f32 %v1414, %v1484
  %v1501 = vmul.f32 %v1415, %v1472
  %v1502 = vmul.f32 %v1416, %v1476
  %v1503 = vmul.f32 %v1417, %v1480
  %v1504 = vmul.f32 %v1418, %v1484
  %v1505 = vmul.f32 %v1419, %v1472
  %v1506 = vmul.f32 %v1420, %v1476
  %v1507 = vmul.f32 %v1421, %v1480
  %v1508 = vmul.f32 %v1422, %v1484
  %v1509 = vmul.f32 %v1423, %v1472
  %v1510 = vmul.f32 %v1424, %v1476
  %v1511 = vmul.f32 %v1425, %v1480
  %v1512 = vmul.f32 %v1426, %v1484
  %v1513 = vmul.f32 %v1427, %v1472
  %v1514 = vmul.f32 %v1428, %v1476
  %v1515 = vmul.f32 %v1429, %v1480
  %v1516 = vmul.f32 %v1430, %v1484
  %v1517 = vmul.f32 %v1431, %v1472
  %v1518 = vmul.f32 %v1432, %v1476
  %v1519 = vmul.f32 %v1433, %v1480
  %v1520 = vmul.f32 %v1434, %v1484
  %v1521 = vmul.f32 %v1435, %v1472
  %v1522 = vmul.f32 %v1436, %v1476
  %v1523 = vmul.f32 %v1437, %v1480
  %v1524 = vmul.f32 %v1438, %v1484
  %v1525 = vmul.f32 %v1439, %v1472
  %v1526 = vmul.f32 %v1440, %v1476
  %v1527 = vmul.f32 %v1441, %v1480
  %v1528 = vmul.f32 %v1442, %v1484
  %v1529 = vmul.f32 %v1443, %v1472
  %v1530 = vmul.f32 %v1444, %v1476
  %v1531 = vmul.f32 %v1445, %v1480
  %v1532 = vmul.f32 %v1446, %v1484
  %v1533 = vmul.f32 %v1447, %v1472
  %v1534 = vmul.f32 %v1448, %v1476
  %v1535 = vmul.f32 %v1449, %v1480
  %v1536 = vmul.f32 %v1450, %v1484
  %v1537 = vmul.f32 %v1451, %v1472
  %v1538 = vmul.f32 %v1452, %v1476
  %v1539 = vmul.f32 %v1453, %v1480
  %v1540 = vmul.f32 %v1454, %v1484
  %v1541 = vmul.f32 %v1455, %v1472
  %v1542 = vmul.f32 %v1456, %v1476
  %v1543 = vmul.f32 %v1457, %v1480
  %v1544 = vmul.f32 %v1458, %v1484
  %v1545 = vmul.f32 %v1459, %v1472
  %v1546 = vmul.f32 %v1460, %v1476
  %v1547 = vmul.f32 %v1461, %v1480
  %v1548 = vmul.f32 %v1462, %v1484
  %v1549 = vmul.f32 %v1463, %v1472
  %v1550 = vmul.f32 %v1464, %v1476
  %v1551 = vmul.f32 %v1465, %v1480
  %v1552 = vmul.f32 %v1466, %v1484
  %v1553 = vld [vmem:[#allocation2] sm:$0xff]
  %v1554 = vld [vmem:[#allocation2 + $0x8] sm:$0xff]
  %v1555 = vld [vmem:[#allocation2 + $0x10] sm:$0xff]
  %v1556 = vld [vmem:[#allocation2 + $0x18] sm:$0xff]
  %v1557 = vld [vmem:[#allocation2 + $0x20] sm:$0xff]
  %v1558 = vld [vmem:[#allocation2 + $0x28] sm:$0xff]
  %v1559 = vld [vmem:[#allocation2 + $0x30] sm:$0xff]
  %v1560 = vld [vmem:[#allocation2 + $0x38] sm:$0xff]
  %v1561 = vld [vmem:[#allocation2 + $0x40] sm:$0xff]
  %v1562 = vld [vmem:[#allocation2 + $0x48] sm:$0xff]
  %v1563 = vld [vmem:[#allocation2 + $0x50] sm:$0xff]
  %v1564 = vld [vmem:[#allocation2 + $0x58] sm:$0xff]
  %v1565 = vld [vmem:[#allocation2 + $0x60] sm:$0xff]
  %v1566 = vld [vmem:[#allocation2 + $0x68] sm:$0xff]
  %v1567 = vld [vmem:[#allocation2 + $0x70] sm:$0xff]
  %v1568 = vld [vmem:[#allocation2 + $0x78] sm:$0xff]
  %v1569 = vpack.c.bf16 %v1493, %v1489
  %v1570 = vpack.c.bf16 %v1494, %v1490
  %v1571 = vpack.c.bf16 %v1495, %v1491
  %v1572 = vpack.c.bf16 %v1496, %v1492
  %v1573 = vpack.c.bf16 %v1501, %v1497
  %v1574 = vpack.c.bf16 %v1502, %v1498
  %v1575 = vpack.c.bf16 %v1503, %v1499
  %v1576 = vpack.c.bf16 %v1504, %v1500
  %v1577 = vpack.c.bf16 %v1509, %v1505
  %v1578 = vpack.c.bf16 %v1510, %v1506
  %v1579 = vpack.c.bf16 %v1511, %v1507
  %v1580 = vpack.c.bf16 %v1512, %v1508
  %v1581 = vpack.c.bf16 %v1517, %v1513
  %v1582 = vpack.c.bf16 %v1518, %v1514
  %v1583 = vpack.c.bf16 %v1519, %v1515
  %v1584 = vpack.c.bf16 %v1520, %v1516
  %v1585 = vpack.c.bf16 %v1525, %v1521
  %v1586 = vpack.c.bf16 %v1526, %v1522
  %v1587 = vpack.c.bf16 %v1527, %v1523
  %v1588 = vpack.c.bf16 %v1528, %v1524
  %v1589 = vpack.c.bf16 %v1533, %v1529
  %v1590 = vpack.c.bf16 %v1534, %v1530
  %v1591 = vpack.c.bf16 %v1535, %v1531
  %v1592 = vpack.c.bf16 %v1536, %v1532
  %v1593 = vpack.c.bf16 %v1541, %v1537
  %v1594 = vpack.c.bf16 %v1542, %v1538
  %v1595 = vpack.c.bf16 %v1543, %v1539
  %v1596 = vpack.c.bf16 %v1544, %v1540
  %v1597 = vpack.c.bf16 %v1549, %v1545
  %v1598 = vpack.c.bf16 %v1550, %v1546
  %v1599 = vpack.c.bf16 %v1551, %v1547
  %v1600 = vpack.c.bf16 %v1552, %v1548
  %v1601 = vld [vmem:[%s70] sm:$0xf]
  %v1602 = vld [vmem:[%s70 + $0x4] sm:$0xf]
  %v1603 = vld [vmem:[%s70 + $0x8] sm:$0xf]
  %v1604 = vld [vmem:[%s70 + $0xc] sm:$0xf]
  %v1605 = vld [vmem:[%s70 + $0x10] sm:$0xf]
  %v1606 = vld [vmem:[%s70 + $0x14] sm:$0xf]
  %v1607 = vld [vmem:[%s70 + $0x18] sm:$0xf]
  %v1608 = vld [vmem:[%s70 + $0x1c] sm:$0xf]
  %v1609 = vld [vmem:[%s70 + $0x20] sm:$0xf]
  %v1610 = vld [vmem:[%s70 + $0x24] sm:$0xf]
  %v1611 = vld [vmem:[%s70 + $0x28] sm:$0xf]
  %v1612 = vld [vmem:[%s70 + $0x2c] sm:$0xf]
  %v1613 = vld [vmem:[%s70 + $0x30] sm:$0xf]
  %v1614 = vld [vmem:[%s70 + $0x34] sm:$0xf]
  %v1615 = vld [vmem:[%s70 + $0x38] sm:$0xf]
  %v1616 = vld [vmem:[%s70 + $0x3c] sm:$0xf]
  %v1617 = vld [vmem:[%s70 + $0x40] sm:$0xf]
  %v1618 = vld [vmem:[%s70 + $0x44] sm:$0xf]
  %v1619 = vld [vmem:[%s70 + $0x48] sm:$0xf]
  %v1620 = vld [vmem:[%s70 + $0x4c] sm:$0xf]
  %v1621 = vld [vmem:[%s70 + $0x50] sm:$0xf]
  %v1622 = vld [vmem:[%s70 + $0x54] sm:$0xf]
  %v1623 = vld [vmem:[%s70 + $0x58] sm:$0xf]
  %v1624 = vld [vmem:[%s70 + $0x5c] sm:$0xf]
  %v1625 = vld [vmem:[%s70 + $0x60] sm:$0xf]
  %v1626 = vld [vmem:[%s70 + $0x64] sm:$0xf]
  %v1627 = vld [vmem:[%s70 + $0x68] sm:$0xf]
  %v1628 = vld [vmem:[%s70 + $0x6c] sm:$0xf]
  %v1629 = vld [vmem:[%s70 + $0x70] sm:$0xf]
  %v1630 = vld [vmem:[%s70 + $0x74] sm:$0xf]
  %v1631 = vld [vmem:[%s70 + $0x78] sm:$0xf]
  %v1632 = vld [vmem:[%s70 + $0x7c] sm:$0xf]
  %v1633 = vld [vmem:[%s70 + $0x80] sm:$0xf]
  %v1634 = vld [vmem:[%s70 + $0x84] sm:$0xf]
  %v1635 = vld [vmem:[%s70 + $0x88] sm:$0xf]
  %v1636 = vld [vmem:[%s70 + $0x8c] sm:$0xf]
  %v1637 = vld [vmem:[%s70 + $0x90] sm:$0xf]
  %v1638 = vld [vmem:[%s70 + $0x94] sm:$0xf]
  %v1639 = vld [vmem:[%s70 + $0x98] sm:$0xf]
  %v1640 = vld [vmem:[%s70 + $0x9c] sm:$0xf]
  %v1641 = vld [vmem:[%s70 + $0xa0] sm:$0xf]
  %v1642 = vld [vmem:[%s70 + $0xa4] sm:$0xf]
  %v1643 = vld [vmem:[%s70 + $0xa8] sm:$0xf]
  %v1644 = vld [vmem:[%s70 + $0xac] sm:$0xf]
  %v1645 = vld [vmem:[%s70 + $0xb0] sm:$0xf]
  %v1646 = vld [vmem:[%s70 + $0xb4] sm:$0xf]
  %v1647 = vld [vmem:[%s70 + $0xb8] sm:$0xf]
  %v1648 = vld [vmem:[%s70 + $0xbc] sm:$0xf]
  %v1649 = vld [vmem:[%s70 + $0xc0] sm:$0xf]
  %v1650 = vld [vmem:[%s70 + $0xc4] sm:$0xf]
  %v1651 = vld [vmem:[%s70 + $0xc8] sm:$0xf]
  %v1652 = vld [vmem:[%s70 + $0xcc] sm:$0xf]
  %v1653 = vld [vmem:[%s70 + $0xd0] sm:$0xf]
  %v1654 = vld [vmem:[%s70 + $0xd4] sm:$0xf]
  %v1655 = vld [vmem:[%s70 + $0xd8] sm:$0xf]
  %v1656 = vld [vmem:[%s70 + $0xdc] sm:$0xf]
  %v1657 = vld [vmem:[%s70 + $0xe0] sm:$0xf]
  %v1658 = vld [vmem:[%s70 + $0xe4] sm:$0xf]
  %v1659 = vld [vmem:[%s70 + $0xe8] sm:$0xf]
  %v1660 = vld [vmem:[%s70 + $0xec] sm:$0xf]
  %v1661 = vld [vmem:[%s70 + $0xf0] sm:$0xf]
  %v1662 = vld [vmem:[%s70 + $0xf4] sm:$0xf]
  %v1663 = vld [vmem:[%s70 + $0xf8] sm:$0xf]
  %v1664 = vld [vmem:[%s70 + $0xfc] sm:$0xf]
  %v1729 = vunpack.c.l.b16 %v1601
  %v1730 = vunpack.c.l.b16 %v1602
  %v1731 = vunpack.c.l.b16 %v1603
  %v1732 = vunpack.c.l.b16 %v1604
  %v1733 = vunpack.c.l.b16 %v1605
  %v1734 = vunpack.c.l.b16 %v1606
  %v1735 = vunpack.c.l.b16 %v1607
  %v1736 = vunpack.c.l.b16 %v1608
  %v1737 = vunpack.c.l.b16 %v1609
  %v1738 = vunpack.c.l.b16 %v1610
  %v1739 = vunpack.c.l.b16 %v1611
  %v1740 = vunpack.c.l.b16 %v1612
  %v1741 = vunpack.c.l.b16 %v1613
  %v1742 = vunpack.c.l.b16 %v1614
  %v1743 = vunpack.c.l.b16 %v1615
  %v1744 = vunpack.c.l.b16 %v1616
  %v1745 = vunpack.c.l.b16 %v1617
  %v1746 = vunpack.c.l.b16 %v1618
  %v1747 = vunpack.c.l.b16 %v1619
  %v1748 = vunpack.c.l.b16 %v1620
  %v1749 = vunpack.c.l.b16 %v1621
  %v1750 = vunpack.c.l.b16 %v1622
  %v1751 = vunpack.c.l.b16 %v1623
  %v1752 = vunpack.c.l.b16 %v1624
  %v1753 = vunpack.c.l.b16 %v1625
  %v1754 = vunpack.c.l.b16 %v1626
  %v1755 = vunpack.c.l.b16 %v1627
  %v1756 = vunpack.c.l.b16 %v1628
  %v1757 = vunpack.c.l.b16 %v1629
  %v1758 = vunpack.c.l.b16 %v1630
  %v1759 = vunpack.c.l.b16 %v1631
  %v1760 = vunpack.c.l.b16 %v1632
  %v1761 = vunpack.c.l.b16 %v1633
  %v1762 = vunpack.c.l.b16 %v1634
  %v1763 = vunpack.c.l.b16 %v1635
  %v1764 = vunpack.c.l.b16 %v1636
  %v1765 = vunpack.c.l.b16 %v1637
  %v1766 = vunpack.c.l.b16 %v1638
  %v1767 = vunpack.c.l.b16 %v1639
  %v1768 = vunpack.c.l.b16 %v1640
  %v1769 = vunpack.c.l.b16 %v1641
  %v1770 = vunpack.c.l.b16 %v1642
  %v1771 = vunpack.c.l.b16 %v1643
  %v1772 = vunpack.c.l.b16 %v1644
  %v1773 = vunpack.c.l.b16 %v1645
  %v1774 = vunpack.c.l.b16 %v1646
  %v1775 = vunpack.c.l.b16 %v1647
  %v1776 = vunpack.c.l.b16 %v1648
  %v1777 = vunpack.c.l.b16 %v1649
  %v1778 = vunpack.c.l.b16 %v1650
  %v1779 = vunpack.c.l.b16 %v1651
  %v1780 = vunpack.c.l.b16 %v1652
  %v1781 = vunpack.c.l.b16 %v1653
  %v1782 = vunpack.c.l.b16 %v1654
  %v1783 = vunpack.c.l.b16 %v1655
  %v1784 = vunpack.c.l.b16 %v1656
  %v1785 = vunpack.c.l.b16 %v1657
  %v1786 = vunpack.c.l.b16 %v1658
  %v1787 = vunpack.c.l.b16 %v1659
  %v1788 = vunpack.c.l.b16 %v1660
  %v1789 = vunpack.c.l.b16 %v1661
  %v1790 = vunpack.c.l.b16 %v1662
  %v1791 = vunpack.c.l.b16 %v1663
  %v1792 = vunpack.c.l.b16 %v1664
  %v1793 = vpack.c.b16 %v1730, %v1729
  %v1794 = vpack.c.b16 %v1732, %v1731
  %v1795 = vpack.c.b16 %v1734, %v1733
  %v1796 = vpack.c.b16 %v1736, %v1735
  %v1797 = vpack.c.b16 %v1738, %v1737
  %v1798 = vpack.c.b16 %v1740, %v1739
  %v1799 = vpack.c.b16 %v1742, %v1741
  %v1800 = vpack.c.b16 %v1744, %v1743
  %v1801 = vpack.c.b16 %v1746, %v1745
  %v1802 = vpack.c.b16 %v1748, %v1747
  %v1803 = vpack.c.b16 %v1750, %v1749
  %v1804 = vpack.c.b16 %v1752, %v1751
  %v1805 = vpack.c.b16 %v1754, %v1753
  %v1806 = vpack.c.b16 %v1756, %v1755
  %v1807 = vpack.c.b16 %v1758, %v1757
  %v1808 = vpack.c.b16 %v1760, %v1759
  %v1809 = vpack.c.b16 %v1762, %v1761
  %v1810 = vpack.c.b16 %v1764, %v1763
  %v1811 = vpack.c.b16 %v1766, %v1765
  %v1812 = vpack.c.b16 %v1768, %v1767
  %v1813 = vpack.c.b16 %v1770, %v1769
  %v1814 = vpack.c.b16 %v1772, %v1771
  %v1815 = vpack.c.b16 %v1774, %v1773
  %v1816 = vpack.c.b16 %v1776, %v1775
  %v1817 = vpack.c.b16 %v1778, %v1777
  %v1818 = vpack.c.b16 %v1780, %v1779
  %v1819 = vpack.c.b16 %v1782, %v1781
  %v1820 = vpack.c.b16 %v1784, %v1783
  %v1821 = vpack.c.b16 %v1786, %v1785
  %v1822 = vpack.c.b16 %v1788, %v1787
  %v1823 = vpack.c.b16 %v1790, %v1789
  %v1824 = vpack.c.b16 %v1792, %v1791
  %1857 = vmatprep.subr.bf16.mxu0 0
  %1858 = vmatpush1.bf16.msra.mxu0 %v1793
  %1859 = vmatprep.subr.bf16.mxu0 0
  %1860 = vmatpush1.bf16.msra.mxu0 %v1794
  %1861 = vmatprep.subr.bf16.mxu0 0
  %1862 = vmatpush1.bf16.msra.mxu0 %v1795
  %1863 = vmatprep.subr.bf16.mxu0 0
  %1864 = vmatpush1.bf16.msra.mxu0 %v1796
  %1865 = vmatprep.subr.bf16.mxu0 0
  %1866 = vmatpush1.bf16.msra.mxu0 %v1797
  %1867 = vmatprep.subr.bf16.mxu0 0
  %1868 = vmatpush1.bf16.msra.mxu0 %v1798
  %1869 = vmatprep.subr.bf16.mxu0 0
  %1870 = vmatpush1.bf16.msra.mxu0 %v1799
  %1871 = vmatprep.subr.bf16.mxu0 0
  %1872 = vmatpush1.bf16.msra.mxu0 %v1800
  %1873 = vmatprep.subr.bf16.mxu0 0
  %1874 = vmatpush1.bf16.msra.mxu0 %v1801
  %1875 = vmatprep.subr.bf16.mxu0 0
  %1876 = vmatpush1.bf16.msra.mxu0 %v1802
  %1877 = vmatprep.subr.bf16.mxu0 0
  %1878 = vmatpush1.bf16.msra.mxu0 %v1803
  %1879 = vmatprep.subr.bf16.mxu0 0
  %1880 = vmatpush1.bf16.msra.mxu0 %v1804
  %1881 = vmatprep.subr.bf16.mxu0 0
  %1882 = vmatpush1.bf16.msra.mxu0 %v1805
  %1883 = vmatprep.subr.bf16.mxu0 0
  %1884 = vmatpush1.bf16.msra.mxu0 %v1806
  %1885 = vmatprep.subr.bf16.mxu0 0
  %1886 = vmatpush1.bf16.msra.mxu0 %v1807
  %1887 = vmatprep.subr.bf16.mxu0 0
  %1888 = vmatpush1.bf16.msra.mxu0 %v1808
  %1889 = vmatprep.mubr.bf16.mxu0 %v1570
  %1890 = vmatmul.mubr.bf16.gmra.mrb[0].mxu0 %v1569
  %v1891 = vpop.f32.mrb[0].mxu0
  %v1892 = vadd.f32 0.0, %v1891
  %v1893 = vpop.f32.mrb[0].mxu0
  %v1894 = vpop.f32.mrb[0].mxu0
  %v1895 = vadd.f32 0.0, %v1894
  %v1896 = vpop.f32.mrb[0].mxu0
  %1897 = vmatprep.mubr.bf16.mxu0 %v1574
  %1898 = vmatmul.mubr.bf16.gmra.mrb[0].mxu0 %v1573
  %v1899 = vpop.f32.mrb[0].mxu0
  %v1900 = vadd.f32 0.0, %v1899
  %v1901 = vpop.f32.mrb[0].mxu0
  %v1902 = vpop.f32.mrb[0].mxu0
  %v1903 = vadd.f32 0.0, %v1902
  %v1904 = vpop.f32.mrb[0].mxu0
  %1905 = vmatprep.mubr.bf16.mxu0 %v1578
  %1906 = vmatmul.mubr.bf16.gmra.mrb[0].mxu0 %v1577
  %v1907 = vpop.f32.mrb[0].mxu0
  %v1908 = vadd.f32 0.0, %v1907
  %v1909 = vpop.f32.mrb[0].mxu0
  %v1910 = vpop.f32.mrb[0].mxu0
  %v1911 = vadd.f32 0.0, %v1910
  %v1912 = vpop.f32.mrb[0].mxu0
  %1913 = vmatprep.mubr.bf16.mxu0 %v1582
  %1914 = vmatmul.mubr.bf16.gmra.mrb[0].mxu0 %v1581
  %v1915 = vpop.f32.mrb[0].mxu0
  %v1916 = vadd.f32 0.0, %v1915
  %v1917 = vpop.f32.mrb[0].mxu0
  %v1918 = vpop.f32.mrb[0].mxu0
  %v1919 = vadd.f32 0.0, %v1918
  %v1920 = vpop.f32.mrb[0].mxu0
  %1921 = vmatprep.mubr.bf16.mxu0 %v1586
  %1922 = vmatmul.mubr.bf16.gmra.mrb[0].mxu0 %v1585
  %v1923 = vpop.f32.mrb[0].mxu0
  %v1924 = vadd.f32 0.0, %v1923
  %v1925 = vpop.f32.mrb[0].mxu0
  %v1926 = vpop.f32.mrb[0].mxu0
  %v1927 = vadd.f32 0.0, %v1926
  %v1928 = vpop.f32.mrb[0].mxu0
  %1929 = vmatprep.mubr.bf16.mxu0 %v1590
  %1930 = vmatmul.mubr.bf16.gmra.mrb[0].mxu0 %v1589
  %v1931 = vpop.f32.mrb[0].mxu0
  %v1932 = vadd.f32 0.0, %v1931
  %v1933 = vpop.f32.mrb[0].mxu0
  %v1934 = vpop.f32.mrb[0].mxu0
  %v1935 = vadd.f32 0.0, %v1934
  %v1936 = vpop.f32.mrb[0].mxu0
  %1937 = vmatprep.mubr.bf16.mxu0 %v1594
  %1938 = vmatmul.mubr.bf16.gmra.mrb[0].mxu0 %v1593
  %v1939 = vpop.f32.mrb[0].mxu0
  %v1940 = vadd.f32 0.0, %v1939
  %v1941 = vpop.f32.mrb[0].mxu0
  %v1942 = vpop.f32.mrb[0].mxu0
  %v1943 = vadd.f32 0.0, %v1942
  %v1944 = vpop.f32.mrb[0].mxu0
  %1945 = vmatprep.mubr.bf16.mxu0 %v1598
  %1946 = vmatmul.mubr.bf16.gmra.mrb[0].mxu0 %v1597
  %v1947 = vpop.f32.mrb[0].mxu0
  %v1948 = vadd.f32 0.0, %v1947
  %v1949 = vpop.f32.mrb[0].mxu0
  %v1950 = vpop.f32.mrb[0].mxu0
  %v1951 = vadd.f32 0.0, %v1950
  %v1952 = vpop.f32.mrb[0].mxu0
  %1953 = vdwg.mxu0
  %1954 = vmatprep.subr.bf16.mxu0 0
  %1955 = vmatpush1.bf16.msra.mxu0 %v1809
  %1956 = vmatprep.subr.bf16.mxu0 0
  %1957 = vmatpush1.bf16.msra.mxu0 %v1810
  %1958 = vmatprep.subr.bf16.mxu0 0
  %1959 = vmatpush1.bf16.msra.mxu0 %v1811
  %1960 = vmatprep.subr.bf16.mxu0 0
  %1961 = vmatpush1.bf16.msra.mxu0 %v1812
  %1962 = vmatprep.subr.bf16.mxu0 0
  %1963 = vmatpush1.bf16.msra.mxu0 %v1813
  %1964 = vmatprep.subr.bf16.mxu0 0
  %1965 = vmatpush1.bf16.msra.mxu0 %v1814
  %1966 = vmatprep.subr.bf16.mxu0 0
  %1967 = vmatpush1.bf16.msra.mxu0 %v1815
  %1968 = vmatprep.subr.bf16.mxu0 0
  %1969 = vmatpush1.bf16.msra.mxu0 %v1816
  %1970 = vmatprep.subr.bf16.mxu0 0
  %1971 = vmatpush1.bf16.msra.mxu0 %v1817
  %1972 = vmatprep.subr.bf16.mxu0 0
  %1973 = vmatpush1.bf16.msra.mxu0 %v1818
  %1974 = vmatprep.subr.bf16.mxu0 0
  %1975 = vmatpush1.bf16.msra.mxu0 %v1819
  %1976 = vmatprep.subr.bf16.mxu0 0
  %1977 = vmatpush1.bf16.msra.mxu0 %v1820
  %1978 = vmatprep.subr.bf16.mxu0 0
  %1979 = vmatpush1.bf16.msra.mxu0 %v1821
  %1980 = vmatprep.subr.bf16.mxu0 0
  %1981 = vmatpush1.bf16.msra.mxu0 %v1822
  %1982 = vmatprep.subr.bf16.mxu0 0
  %1983 = vmatpush1.bf16.msra.mxu0 %v1823
  %1984 = vmatprep.subr.bf16.mxu0 0
  %1985 = vmatpush1.bf16.msra.mxu0 %v1824
  %1986 = vmatprep.mubr.bf16.mxu0 %v1572
  %1987 = vmatmul.mubr.bf16.gmra.mrb[0].mxu0 %v1571
  %v1988 = vpop.f32.mrb[0].mxu0
  %v1989 = vadd.f32 %v1892, %v1988
  %v1990 = vpop.f32.mrb[0].mxu0
  %v1991 = vpop.f32.mrb[0].mxu0
  %v1992 = vadd.f32 %v1895, %v1991
  %v1993 = vpop.f32.mrb[0].mxu0
  %1994 = vmatprep.mubr.bf16.mxu0 %v1576
  %1995 = vmatmul.mubr.bf16.gmra.mrb[0].mxu0 %v1575
  %v1996 = vpop.f32.mrb[0].mxu0
  %v1997 = vadd.f32 %v1900, %v1996
  %v1998 = vpop.f32.mrb[0].mxu0
  %v1999 = vpop.f32.mrb[0].mxu0
  %v2000 = vadd.f32 %v1903, %v1999
  %v2001 = vpop.f32.mrb[0].mxu0
  %2002 = vmatprep.mubr.bf16.mxu0 %v1580
  %2003 = vmatmul.mubr.bf16.gmra.mrb[0].mxu0 %v1579
  %v2004 = vpop.f32.mrb[0].mxu0
  %v2005 = vadd.f32 %v1908, %v2004
  %v2006 = vpop.f32.mrb[0].mxu0
  %v2007 = vpop.f32.mrb[0].mxu0
  %v2008 = vadd.f32 %v1911, %v2007
  %v2009 = vpop.f32.mrb[0].mxu0
  %2010 = vmatprep.mubr.bf16.mxu0 %v1584
  %2011 = vmatmul.mubr.bf16.gmra.mrb[0].mxu0 %v1583
  %v2012 = vpop.f32.mrb[0].mxu0
  %v2013 = vadd.f32 %v1916, %v2012
  %v2014 = vpop.f32.mrb[0].mxu0
  %v2015 = vpop.f32.mrb[0].mxu0
  %v2016 = vadd.f32 %v1919, %v2015
  %v2017 = vpop.f32.mrb[0].mxu0
  %2018 = vmatprep.mubr.bf16.mxu0 %v1588
  %2019 = vmatmul.mubr.bf16.gmra.mrb[0].mxu0 %v1587
  %v2020 = vpop.f32.mrb[0].mxu0
  %v2021 = vadd.f32 %v1924, %v2020
  %v2022 = vpop.f32.mrb[0].mxu0
  %v2023 = vpop.f32.mrb[0].mxu0
  %v2024 = vadd.f32 %v1927, %v2023
  %v2025 = vpop.f32.mrb[0].mxu0
  %2026 = vmatprep.mubr.bf16.mxu0 %v1592
  %2027 = vmatmul.mubr.bf16.gmra.mrb[0].mxu0 %v1591
  %v2028 = vpop.f32.mrb[0].mxu0
  %v2029 = vadd.f32 %v1932, %v2028
  %v2030 = vpop.f32.mrb[0].mxu0
  %v2031 = vpop.f32.mrb[0].mxu0
  %v2032 = vadd.f32 %v1935, %v2031
  %v2033 = vpop.f32.mrb[0].mxu0
  %2034 = vmatprep.mubr.bf16.mxu0 %v1596
  %2035 = vmatmul.mubr.bf16.gmra.mrb[0].mxu0 %v1595
  %v2036 = vpop.f32.mrb[0].mxu0
  %v2037 = vadd.f32 %v1940, %v2036
  %v2038 = vpop.f32.mrb[0].mxu0
  %v2039 = vpop.f32.mrb[0].mxu0
  %v2040 = vadd.f32 %v1943, %v2039
  %v2041 = vpop.f32.mrb[0].mxu0
  %2042 = vmatprep.mubr.bf16.mxu0 %v1600
  %2043 = vmatmul.mubr.bf16.gmra.mrb[0].mxu0 %v1599
  %v2044 = vpop.f32.mrb[0].mxu0
  %v2045 = vadd.f32 %v1948, %v2044
  %v2046 = vpop.f32.mrb[0].mxu0
  %v2047 = vpop.f32.mrb[0].mxu0
  %v2048 = vadd.f32 %v1951, %v2047
  %v2049 = vpop.f32.mrb[0].mxu0
  %2050 = vdwg.mxu0
  %v2051 = vadd.f32 %v1553, %v1989
  %v2052 = vadd.f32 %v1554, %v1992
  %v2053 = vadd.f32 %v1555, %v1997
  %v2054 = vadd.f32 %v1556, %v2000
  %v2055 = vadd.f32 %v1557, %v2005
  %v2056 = vadd.f32 %v1558, %v2008
  %v2057 = vadd.f32 %v1559, %v2013
  %v2058 = vadd.f32 %v1560, %v2016
  %v2059 = vadd.f32 %v1561, %v2021
  %v2060 = vadd.f32 %v1562, %v2024
  %v2061 = vadd.f32 %v1563, %v2029
  %v2062 = vadd.f32 %v1564, %v2032
  %v2063 = vadd.f32 %v1565, %v2037
  %v2064 = vadd.f32 %v1566, %v2040
  %v2065 = vadd.f32 %v1567, %v2045
  %v2066 = vadd.f32 %v1568, %v2048
  %2067 = vst.msk [vmem:[#allocation2] sm:$0xff] %vm350, %v2051
  %2068 = vst.msk [vmem:[#allocation2 + $0x8] sm:$0xff] %vm350, %v2052
  %2069 = vst.msk [vmem:[#allocation2 + $0x10] sm:$0xff] %vm350, %v2053
  %2070 = vst.msk [vmem:[#allocation2 + $0x18] sm:$0xff] %vm350, %v2054
  %2071 = vst.msk [vmem:[#allocation2 + $0x20] sm:$0xff] %vm350, %v2055
  %2072 = vst.msk [vmem:[#allocation2 + $0x28] sm:$0xff] %vm350, %v2056
  %2073 = vst.msk [vmem:[#allocation2 + $0x30] sm:$0xff] %vm350, %v2057
  %2074 = vst.msk [vmem:[#allocation2 + $0x38] sm:$0xff] %vm350, %v2058
  %2075 = vst.msk [vmem:[#allocation2 + $0x40] sm:$0xff] %vm350, %v2059
  %2076 = vst.msk [vmem:[#allocation2 + $0x48] sm:$0xff] %vm350, %v2060
  %2077 = vst.msk [vmem:[#allocation2 + $0x50] sm:$0xff] %vm350, %v2061
  %2078 = vst.msk [vmem:[#allocation2 + $0x58] sm:$0xff] %vm350, %v2062
  %2079 = vst.msk [vmem:[#allocation2 + $0x60] sm:$0xff] %vm350, %v2063
  %2080 = vst.msk [vmem:[#allocation2 + $0x68] sm:$0xff] %vm350, %v2064
  %2081 = vst.msk [vmem:[#allocation2 + $0x70] sm:$0xff] %vm350, %v2065
  %2082 = vst.msk [vmem:[#allocation2 + $0x78] sm:$0xff] %vm350, %v2066
  // Predicated region
  $region22: #{_ffn_pallas_masked.1} parent=0 // pred_check
    %p2083 = pneg %p81
  $region23: #{_ffn_pallas_masked.1} parent=0 // pred_check_branch
    %2085 = sbr.rel (%p2083) target = $region25
  $region24: #{_ffn_pallas_masked.1} parent=0 // pred_region
    %v2086 = vld [vmem:[#allocation2] sm:$0xff]
    %v2087 = vld [vmem:[#allocation2 + $0x8] sm:$0xff]
    %v2088 = vld [vmem:[#allocation2 + $0x10] sm:$0xff]
    %v2089 = vld [vmem:[#allocation2 + $0x18] sm:$0xff]
    %v2090 = vld [vmem:[#allocation2 + $0x20] sm:$0xff]
    %v2091 = vld [vmem:[#allocation2 + $0x28] sm:$0xff]
    %v2092 = vld [vmem:[#allocation2 + $0x30] sm:$0xff]
    %v2093 = vld [vmem:[#allocation2 + $0x38] sm:$0xff]
    %v2094 = vld [vmem:[#allocation2 + $0x40] sm:$0xff]
    %v2095 = vld [vmem:[#allocation2 + $0x48] sm:$0xff]
    %v2096 = vld [vmem:[#allocation2 + $0x50] sm:$0xff]
    %v2097 = vld [vmem:[#allocation2 + $0x58] sm:$0xff]
    %v2098 = vld [vmem:[#allocation2 + $0x60] sm:$0xff]
    %v2099 = vld [vmem:[#allocation2 + $0x68] sm:$0xff]
    %v2100 = vld [vmem:[#allocation2 + $0x70] sm:$0xff]
    %v2101 = vld [vmem:[#allocation2 + $0x78] sm:$0xff]
    %2102 = vst.msk [vmem:[%s5] sm:$0xff] %vm350, %v2086
    %2103 = vst.msk [vmem:[%s5 + $0x8] sm:$0xff] %vm350, %v2087
    %2104 = vst.msk [vmem:[%s5 + $0x10] sm:$0xff] %vm350, %v2088
    %2105 = vst.msk [vmem:[%s5 + $0x18] sm:$0xff] %vm350, %v2089
    %2106 = vst.msk [vmem:[%s5 + $0x20] sm:$0xff] %vm350, %v2090
    %2107 = vst.msk [vmem:[%s5 + $0x28] sm:$0xff] %vm350, %v2091
    %2108 = vst.msk [vmem:[%s5 + $0x30] sm:$0xff] %vm350, %v2092
    %2109 = vst.msk [vmem:[%s5 + $0x38] sm:$0xff] %vm350, %v2093
    %2110 = vst.msk [vmem:[%s5 + $0x40] sm:$0xff] %vm350, %v2094
    %2111 = vst.msk [vmem:[%s5 + $0x48] sm:$0xff] %vm350, %v2095
    %2112 = vst.msk [vmem:[%s5 + $0x50] sm:$0xff] %vm350, %v2096
    %2113 = vst.msk [vmem:[%s5 + $0x58] sm:$0xff] %vm350, %v2097
    %2114 = vst.msk [vmem:[%s5 + $0x60] sm:$0xff] %vm350, %v2098
    %2115 = vst.msk [vmem:[%s5 + $0x68] sm:$0xff] %vm350, %v2099
    %2116 = vst.msk [vmem:[%s5 + $0x70] sm:$0xff] %vm350, %v2100
    %2117 = vst.msk [vmem:[%s5 + $0x78] sm:$0xff] %vm350, %v2101
  $region25: #{_ffn_pallas_masked.1} parent=0 // pred_fallthru
    _
  // Predicated region
  $region26: #{_ffn_pallas_masked.1} parent=0 // pred_check
    _
  $region27: #{_ffn_pallas_masked.1} parent=0 // pred_check_branch
    %2119 = sbr.rel (0) target = $region29
  $region28: #{_ffn_pallas_masked.1} parent=0 // pred_region
    _
  $region29: #{_ffn_pallas_masked.1} parent=0 // pred_fallthru
    _
  // Predicated region
  $region30: #{_ffn_pallas_masked.1} parent=0 // pred_check
    _
  $region31: #{_ffn_pallas_masked.1} parent=0 // pred_check_branch
    %2121 = sbr.rel (0) target = $region33
  $region32: #{_ffn_pallas_masked.1} parent=0 // pred_region
    _
  $region33: #{_ffn_pallas_masked.1} parent=0 // pred_fallthru
    _

</llo_original>
